<compile_context>
chip_gen: v6e
topology: v6e:2x2x1
jax: 0.10.0
libtpu: 0.0.40
codegen_flags: <defaults>
</compile_context>

<pallas_src>
import jax
import jax.numpy as jnp
import numpy as np
from jax.experimental import pallas as pl
from jax.experimental.pallas import tpu as pltpu


# ----------------------------- wrapper-side prep -----------------------------

def _pack_stage(w_pt, scale, bias, W):
    """PyTorch OIHW factorized conv weight -> BN-folded (k, Cin, Cout) + bias row."""
    Cout, Cin, kh, kw = w_pt.shape
    assert kh == 1 or kw == 1, "FCU stages must be factorized (k,1) or (1,k) convs"
    k = max(kh, kw)
    assert k % 2 == 1, "only odd kernel sizes match 'same' padding with pad=k//2"
    w = jnp.transpose(w_pt.reshape(Cout, Cin, k), (2, 1, 0))       # (k, Cin, Cout)
    w = w * scale[None, None, :]                                    # fold BN scale
    b_row = jnp.tile(bias, W)[None, :].astype(jnp.float32)          # (1, W*Cout)
    return w.astype(jnp.float32), b_row, k, (kh > 1)


def _h_stage_mats(w, W):
    # (k, Cin, Cout) -> (k, W*Cin, W*Cout) block-diagonal channel-mix matrices.
    eye = jnp.eye(W, dtype=jnp.float32)
    return jnp.stack([jnp.kron(eye, w[d]) for d in range(w.shape[0])])


def _w_stage_mat(w, W):
    # (k, Cin, Cout) -> (W*Cin, W*Cout) banded matrix implementing the (1,k) conv
    # along W; zero padding at the W edges comes from the truncated shifted eye.
    k = w.shape[0]
    p = k // 2
    m = jnp.zeros((W * w.shape[1], W * w.shape[2]), jnp.float32)
    for d in range(k):
        m = m + jnp.kron(jnp.eye(W, W, k=p - d, dtype=jnp.float32), w[d])
    return m


# -------------------------------- forward ------------------------------------

def fcu_forward(x_nchw, params, row_tile=None):
    """params = 4 stages of (w_pytorch_OIHW, bn_scale, bn_bias)."""
    N, C, H, W = x_nchw.shape
    assert len(params) == 4
    WC = W * C

    packed = [_pack_stage(w, s, b, W) for (w, s, b) in params]
    assert [pk[3] for pk in packed] == [True, False, True, False], \
        "FCU stage order is (k,1),(1,k),(k,1),(1,k)"
    K = packed[0][2]
    assert all(pk[2] == K for pk in packed)
    p = K // 2
    HALO = 2 * p                       # rows of halo needed for the two H-convs

    # Row tiling (bounded VMEM + pipelining).  TH must tile H and satisfy the
    # (8,128) sublane rule.
    TH = row_tile if row_tile is not None else (H if H <= 256 else 256)
    assert H % TH == 0 and (TH % 8 == 0 or TH == H)
    assert TH >= HALO
    HT = H // TH
    R1 = TH + 2 * p                    # rows carried through stages 1-2

    m1 = _h_stage_mats(packed[0][0], W); b1 = packed[0][1]
    m2 = _w_stage_mat(packed[1][0], W);  b2 = packed[1][1]
    m3 = _h_stage_mats(packed[2][0], W); b3 = packed[2][1]
    m4 = _w_stage_mat(packed[3][0], W);  b4 = packed[3][1]

    # Lane-dense packing: (N, C, H, W) -> (N, H, W*C).
    x_pk = jnp.transpose(x_nchw, (0, 2, 3, 1)).reshape(N, H, WC).astype(jnp.float32)

    def kernel(xp_ref, xc_ref, xn_ref,
               m1_ref, b1_ref, m2_ref, b2_ref,
               m3_ref, b3_ref, m4_ref, b4_ref, o_ref):
        t = pl.program_id(1)
        nt = pl.num_programs(1)
        xc = xc_ref[...]                                           # (TH, WC)

        # Halo rows from neighbouring row tiles; zeroed outside the image.
        prev_ok = (t > 0).astype(xc.dtype)
        next_ok = (t < nt - 1).astype(xc.dtype)
        prev_tail = xp_ref[TH - HALO:, :] * prev_ok                # (HALO, WC)
        next_head = xn_ref[:HALO, :] * next_ok                     # (HALO, WC)
        x_ext = jnp.concatenate([prev_tail, xc, next_head], axis=0)  # (TH+2*HALO, WC)

        # Stage 1: (k,1) conv along H + BN + ReLU  (k row-shifted matmuls).
        y = jnp.dot(x_ext[0:R1], m1_ref[0], preferred_element_type=jnp.float32)
        for d in range(1, K):
            y = y + jnp.dot(x_ext[d:d + R1], m1_ref[d],
                            preferred_element_type=jnp.float32)
        y = jnp.maximum(y + b1_ref[...], 0.0)

        # Stage 2: (1,k) conv along W + BN + ReLU  (one banded matmul).
        y = jnp.dot(y, m2_ref[...], preferred_element_type=jnp.float32) + b2_ref[...]
        y = jnp.maximum(y, 0.0)

        # Rows outside the image must act as zero padding for stage 3's H-conv.
        rows = jax.lax.broadcasted_iota(jnp.int32, (R1, 1), 0) + (t * TH - p)
        y = jnp.where((rows >= 0) & (rows < H), y, 0.0)

        # Stage 3: (k,1) conv along H + BN + ReLU  -> central TH rows.
        z = jnp.dot(y[0:TH], m3_ref[0], preferred_element_type=jnp.float32)
        for d in range(1, K):
            z = z + jnp.dot(y[d:d + TH], m3_ref[d],
                            preferred_element_type=jnp.float32)
        z = jnp.maximum(z + b3_ref[...], 0.0)

        # Stage 4: (1,k) conv along W + BN (no ReLU).
        z = jnp.dot(z, m4_ref[...], preferred_element_type=jnp.float32) + b4_ref[...]

        # TODO(synk): Dropout2d only acts in training mode; eval forward is identity.
        o_ref[...] = jnp.maximum(z + xc, 0.0).astype(o_ref.dtype)

    x_cur = pl.BlockSpec((None, TH, WC), lambda n, t: (n, t, 0))
    x_prev = pl.BlockSpec((None, TH, WC), lambda n, t: (n, jnp.maximum(t - 1, 0), 0))
    x_next = pl.BlockSpec((None, TH, WC), lambda n, t: (n, jnp.minimum(t + 1, HT - 1), 0))
    mh_spec = pl.BlockSpec((K, WC, WC), lambda n, t: (0, 0, 0))
    mw_spec = pl.BlockSpec((WC, WC), lambda n, t: (0, 0))
    b_spec = pl.BlockSpec((1, WC), lambda n, t: (0, 0))
    o_spec = pl.BlockSpec((None, TH, WC), lambda n, t: (n, t, 0))

    flops = 2 * N * H * WC * WC * (2 * K + 2)
    bytes_accessed = 4 * (4 * N * H * WC + (2 * K + 2) * WC * WC + 4 * WC)

    out_pk = pl.pallas_call(
        kernel,
        out_shape=jax.ShapeDtypeStruct((N, H, WC), jnp.float32),
        grid=(N, HT),
        in_specs=[x_prev, x_cur, x_next,
                  mh_spec, b_spec, mw_spec, b_spec,
                  mh_spec, b_spec, mw_spec, b_spec],
        out_specs=o_spec,
        compiler_params=pltpu.CompilerParams(
            dimension_semantics=("parallel", "parallel"),
            vmem_limit_bytes=32 * 1024 * 1024),
        cost_estimate=pl.CostEstimate(flops=flops, transcendentals=0,
                                      bytes_accessed=bytes_accessed),
    )(x_pk, x_pk, x_pk, m1, b1, m2, b2, m3, b3, m4, b4)

    return jnp.transpose(out_pk.reshape(N, H, W, C), (0, 3, 1, 2))   # -> NCHW


# ----------------------------- pure-JAX reference ----------------------------

def _ref_stage(x, w_pt, scale, bias, relu):
    kh, kw = w_pt.shape[2], w_pt.shape[3]
    y = jax.lax.conv_general_dilated(
        x, w_pt, window_strides=(1, 1),
        padding=((kh // 2, kh // 2), (kw // 2, kw // 2)),
        dimension_numbers=("NCHW", "OIHW", "NCHW"))
    y = y * scale[None, :, None, None] + bias[None, :, None, None]
    if relu:
        y = jnp.maximum(y, 0.0)
    return y


def fcu_reference(x, params):
    y = x
    for i, (w, s, b) in enumerate(params):
        y = _ref_stage(y, w, s, b, relu=(i != 3))
    return jnp.maximum(y + x, 0.0)


# --------------------------------- main --------------------------------------

if __name__ == "__main__":
    N, C, H, W = 2, 4, 16, 16          # in_channels == out_channels (residual add)
    K = 3                              # kernel_size
    eps = 1e-5

    key = jax.random.PRNGKey(0)
    kx, key = jax.random.split(key)
    x = jax.random.normal(kx, (N, C, H, W), dtype=jnp.float32)

    # 4 factorized conv stages: (K,1), (1,K), (K,1), (1,K); bias=False, eval-mode BN folded.
    stage_kshapes = [(K, 1), (1, K), (K, 1), (1, K)]
    params = []
    for (kh, kw) in stage_kshapes:
        kw_, kg, kb, km, kv, key = jax.random.split(key, 6)
        w = 0.1 * jax.random.normal(kw_, (C, C, kh, kw), dtype=jnp.float32)
        gamma = 1.0 + 0.1 * jax.random.normal(kg, (C,), dtype=jnp.float32)
        beta = 0.1 * jax.random.normal(kb, (C,), dtype=jnp.float32)
        mean = 0.1 * jax.random.normal(km, (C,), dtype=jnp.float32)
        var = jnp.abs(jax.random.normal(kv, (C,), dtype=jnp.float32)) + 0.5
        scale = gamma / jnp.sqrt(var + eps)
        bias = beta - mean * scale
        params.append((w, scale, bias))

    # row_tile=8 -> 2 H-tiles, so the halo stitch AND both image-edge masks are exercised.
    out = jax.block_until_ready(fcu_forward(x, params, row_tile=8))
    ref = jax.block_until_ready(fcu_reference(x, params))
    np.testing.assert_allclose(np.asarray(out), np.asarray(ref), rtol=5e-2, atol=5e-2)

    assert out.shape == (N, C, H, W)
    print("KERNEL_OK")
</pallas_src>

<mosaic_0001>
module attributes {stable_mosaic.version = 11 : i64} {
  func.func @kernel(%arg0: i32, %arg1: i32, %arg2: memref<1x8x64xf32, #tpu.memory_space<vmem>>, %arg3: memref<1x8x64xf32, #tpu.memory_space<vmem>>, %arg4: memref<1x8x64xf32, #tpu.memory_space<vmem>>, %arg5: memref<3x64x64xf32, #tpu.memory_space<vmem>>, %arg6: memref<1x64xf32, #tpu.memory_space<vmem>>, %arg7: memref<64x64xf32, #tpu.memory_space<vmem>>, %arg8: memref<1x64xf32, #tpu.memory_space<vmem>>, %arg9: memref<3x64x64xf32, #tpu.memory_space<vmem>>, %arg10: memref<1x64xf32, #tpu.memory_space<vmem>>, %arg11: memref<64x64xf32, #tpu.memory_space<vmem>>, %arg12: memref<1x64xf32, #tpu.memory_space<vmem>>, %arg13: memref<1x8x64xf32, #tpu.memory_space<vmem>>) attributes {dimension_semantics = [#tpu.dimension_semantics<parallel>, #tpu.dimension_semantics<parallel>], iteration_bounds = array<i64: 2, 2>, scalar_prefetch = 0 : i64, scratch_operands = 0 : i64, tpu.core_type = #tpu.core_type<tc>, window_params = [{transform_indices = @transform_0, window_bounds = array<i64: 1, 8, 64>}, {transform_indices = @transform_1, window_bounds = array<i64: 1, 8, 64>}, {transform_indices = @transform_2, window_bounds = array<i64: 1, 8, 64>}, {pipeline_mode = #tpu.pipeline_mode<synchronous>, transform_indices = @transform_3, window_bounds = array<i64: 3, 64, 64>}, {pipeline_mode = #tpu.pipeline_mode<synchronous>, transform_indices = @transform_4, window_bounds = array<i64: 1, 64>}, {pipeline_mode = #tpu.pipeline_mode<synchronous>, transform_indices = @transform_5, window_bounds = array<i64: 64, 64>}, {pipeline_mode = #tpu.pipeline_mode<synchronous>, transform_indices = @transform_6, window_bounds = array<i64: 1, 64>}, {pipeline_mode = #tpu.pipeline_mode<synchronous>, transform_indices = @transform_7, window_bounds = array<i64: 3, 64, 64>}, {pipeline_mode = #tpu.pipeline_mode<synchronous>, transform_indices = @transform_8, window_bounds = array<i64: 1, 64>}, {pipeline_mode = #tpu.pipeline_mode<synchronous>, transform_indices = @transform_9, window_bounds = array<i64: 64, 64>}, {pipeline_mode = #tpu.pipeline_mode<synchronous>, transform_indices = @transform_10, window_bounds = array<i64: 1, 64>}, {transform_indices = @transform_11, window_bounds = array<i64: 1, 8, 64>}]} {
    %c0 = arith.constant 0 : index
    %c0_0 = arith.constant 0 : index
    %c0_1 = arith.constant 0 : index
    %0 = vector.load %arg3[%c0, %c0_0, %c0_1] : memref<1x8x64xf32, #tpu.memory_space<vmem>>, vector<1x8x64xf32>
    %1 = vector.shape_cast %0 : vector<1x8x64xf32> to vector<8x64xf32>
    %c0_i32 = arith.constant 0 : i32
    %2 = arith.cmpi sgt, %arg1, %c0_i32 : i32
    %3 = arith.extui %2 : i1 to i32
    %4 = arith.sitofp %3 : i32 to f32
    %c1_i32 = arith.constant 1 : i32
    %5 = arith.cmpi slt, %arg1, %c1_i32 : i32
    %6 = arith.extui %5 : i1 to i32
    %7 = arith.sitofp %6 : i32 to f32
    %c0_2 = arith.constant 0 : index
    %c6 = arith.constant 6 : index
    %c0_3 = arith.constant 0 : index
    %8 = vector.load %arg2[%c0_2, %c6, %c0_3] : memref<1x8x64xf32, #tpu.memory_space<vmem>>, vector<1x2x64xf32>
    %9 = vector.shape_cast %8 : vector<1x2x64xf32> to vector<2x64xf32>
    %10 = vector.broadcast %4 : f32 to vector<2x64xf32>
    %11 = arith.mulf %9, %10 : vector<2x64xf32>
    %c0_4 = arith.constant 0 : index
    %c0_5 = arith.constant 0 : index
    %c0_6 = arith.constant 0 : index
    %12 = vector.load %arg4[%c0_4, %c0_5, %c0_6] : memref<1x8x64xf32, #tpu.memory_space<vmem>>, vector<1x2x64xf32>
    %13 = vector.shape_cast %12 : vector<1x2x64xf32> to vector<2x64xf32>
    %14 = vector.broadcast %7 : f32 to vector<2x64xf32>
    %15 = arith.mulf %13, %14 : vector<2x64xf32>
    %16 = tpu.concatenate %11, %1, %15 in 0 : vector<2x64xf32>, vector<8x64xf32>, vector<2x64xf32> -> vector<12x64xf32>
    %17 = vector.extract_strided_slice %16 {offsets = [0, 0], sizes = [10, 64], strides = [1, 1]} : vector<12x64xf32> to vector<10x64xf32>
    %c0_7 = arith.constant 0 : index
    %c0_8 = arith.constant 0 : index
    %c0_9 = arith.constant 0 : index
    %18 = vector.load %arg5[%c0_7, %c0_8, %c0_9] : memref<3x64x64xf32, #tpu.memory_space<vmem>>, vector<1x64x64xf32>
    %19 = vector.shape_cast %18 : vector<1x64x64xf32> to vector<64x64xf32>
    %cst = arith.constant dense<0.000000e+00> : vector<10x64xf32>
    %20 = tpu.matmul %17, %19, %cst {dimension_numbers = #tpu.dot_dimension_numbers<[1], [0], [0], [1], [0, 0, 1, 1], [], []>} : vector<10x64xf32>, vector<64x64xf32>, vector<10x64xf32> -> vector<10x64xf32>
    %21 = vector.extract_strided_slice %16 {offsets = [1, 0], sizes = [10, 64], strides = [1, 1]} : vector<12x64xf32> to vector<10x64xf32>
    %c1 = arith.constant 1 : index
    %c0_10 = arith.constant 0 : index
    %c0_11 = arith.constant 0 : index
    %22 = vector.load %arg5[%c1, %c0_10, %c0_11] : memref<3x64x64xf32, #tpu.memory_space<vmem>>, vector<1x64x64xf32>
    %23 = vector.shape_cast %22 : vector<1x64x64xf32> to vector<64x64xf32>
    %cst_12 = arith.constant dense<0.000000e+00> : vector<10x64xf32>
    %24 = tpu.matmul %21, %23, %cst_12 {dimension_numbers = #tpu.dot_dimension_numbers<[1], [0], [0], [1], [0, 0, 1, 1], [], []>} : vector<10x64xf32>, vector<64x64xf32>, vector<10x64xf32> -> vector<10x64xf32>
    %25 = arith.addf %20, %24 : vector<10x64xf32>
    %26 = vector.extract_strided_slice %16 {offsets = [2, 0], sizes = [10, 64], strides = [1, 1]} : vector<12x64xf32> to vector<10x64xf32>
    %c2 = arith.constant 2 : index
    %c0_13 = arith.constant 0 : index
    %c0_14 = arith.constant 0 : index
    %27 = vector.load %arg5[%c2, %c0_13, %c0_14] : memref<3x64x64xf32, #tpu.memory_space<vmem>>, vector<1x64x64xf32>
    %28 = vector.shape_cast %27 : vector<1x64x64xf32> to vector<64x64xf32>
    %cst_15 = arith.constant dense<0.000000e+00> : vector<10x64xf32>
    %29 = tpu.matmul %26, %28, %cst_15 {dimension_numbers = #tpu.dot_dimension_numbers<[1], [0], [0], [1], [0, 0, 1, 1], [], []>} : vector<10x64xf32>, vector<64x64xf32>, vector<10x64xf32> -> vector<10x64xf32>
    %30 = arith.addf %25, %29 : vector<10x64xf32>
    %c0_16 = arith.constant 0 : index
    %c0_17 = arith.constant 0 : index
    %31 = vector.load %arg6[%c0_16, %c0_17] : memref<1x64xf32, #tpu.memory_space<vmem>>, vector<1x64xf32>
    %32 = vector.broadcast %31 : vector<1x64xf32> to vector<10x64xf32>
    %33 = arith.addf %30, %32 : vector<10x64xf32>
    %cst_18 = arith.constant 0.000000e+00 : f32
    %34 = vector.broadcast %cst_18 : f32 to vector<10x64xf32>
    %35 = arith.maximumf %33, %34 : vector<10x64xf32>
    %c0_19 = arith.constant 0 : index
    %c0_20 = arith.constant 0 : index
    %36 = vector.load %arg7[%c0_19, %c0_20] : memref<64x64xf32, #tpu.memory_space<vmem>>, vector<64x64xf32>
    %cst_21 = arith.constant dense<0.000000e+00> : vector<10x64xf32>
    %37 = tpu.matmul %35, %36, %cst_21 {dimension_numbers = #tpu.dot_dimension_numbers<[1], [0], [0], [1], [0, 0, 1, 1], [], []>} : vector<10x64xf32>, vector<64x64xf32>, vector<10x64xf32> -> vector<10x64xf32>
    %c0_22 = arith.constant 0 : index
    %c0_23 = arith.constant 0 : index
    %38 = vector.load %arg8[%c0_22, %c0_23] : memref<1x64xf32, #tpu.memory_space<vmem>>, vector<1x64xf32>
    %39 = vector.broadcast %38 : vector<1x64xf32> to vector<10x64xf32>
    %40 = arith.addf %37, %39 : vector<10x64xf32>
    %cst_24 = arith.constant 0.000000e+00 : f32
    %41 = vector.broadcast %cst_24 : f32 to vector<10x64xf32>
    %42 = arith.maximumf %40, %41 : vector<10x64xf32>
    %43 = tpu.iota {dimensions = array<i32: 0>} : vector<10x1xi32>
    %c8_i32 = arith.constant 8 : i32
    %44 = arith.muli %arg1, %c8_i32 : i32
    %c1_i32_25 = arith.constant 1 : i32
    %45 = arith.subi %44, %c1_i32_25 : i32
    %46 = vector.broadcast %45 : i32 to vector<10x1xi32>
    %47 = arith.addi %43, %46 : vector<10x1xi32>
    %c0_i32_26 = arith.constant 0 : i32
    %48 = vector.broadcast %c0_i32_26 : i32 to vector<10x1xi32>
    %49 = arith.cmpi sge, %47, %48 : vector<10x1xi32>
    %c16_i32 = arith.constant 16 : i32
    %50 = vector.broadcast %c16_i32 : i32 to vector<10x1xi32>
    %51 = arith.cmpi slt, %47, %50 : vector<10x1xi32>
    %52 = arith.andi %49, %51 : vector<10x1xi1>
    %cst_27 = arith.constant 0.000000e+00 : f32
    %53 = vector.shape_cast %52 : vector<10x1xi1> to vector<10x1xi1>
    %54 = vector.broadcast %53 : vector<10x1xi1> to vector<10x64xi1>
    %55 = vector.broadcast %cst_27 : f32 to vector<10x64xf32>
    %56 = arith.select %54, %42, %55 : vector<10x64xi1>, vector<10x64xf32>
    %57 = vector.extract_strided_slice %56 {offsets = [0, 0], sizes = [8, 64], strides = [1, 1]} : vector<10x64xf32> to vector<8x64xf32>
    %c0_28 = arith.constant 0 : index
    %c0_29 = arith.constant 0 : index
    %c0_30 = arith.constant 0 : index
    %58 = vector.load %arg9[%c0_28, %c0_29, %c0_30] : memref<3x64x64xf32, #tpu.memory_space<vmem>>, vector<1x64x64xf32>
    %59 = vector.shape_cast %58 : vector<1x64x64xf32> to vector<64x64xf32>
    %cst_31 = arith.constant dense<0.000000e+00> : vector<8x64xf32>
    %60 = tpu.matmul %57, %59, %cst_31 {dimension_numbers = #tpu.dot_dimension_numbers<[1], [0], [0], [1], [0, 0, 1, 1], [], []>} : vector<8x64xf32>, vector<64x64xf32>, vector<8x64xf32> -> vector<8x64xf32>
    %61 = vector.extract_strided_slice %56 {offsets = [1, 0], sizes = [8, 64], strides = [1, 1]} : vector<10x64xf32> to vector<8x64xf32>
    %c1_32 = arith.constant 1 : index
    %c0_33 = arith.constant 0 : index
    %c0_34 = arith.constant 0 : index
    %62 = vector.load %arg9[%c1_32, %c0_33, %c0_34] : memref<3x64x64xf32, #tpu.memory_space<vmem>>, vector<1x64x64xf32>
    %63 = vector.shape_cast %62 : vector<1x64x64xf32> to vector<64x64xf32>
    %cst_35 = arith.constant dense<0.000000e+00> : vector<8x64xf32>
    %64 = tpu.matmul %61, %63, %cst_35 {dimension_numbers = #tpu.dot_dimension_numbers<[1], [0], [0], [1], [0, 0, 1, 1], [], []>} : vector<8x64xf32>, vector<64x64xf32>, vector<8x64xf32> -> vector<8x64xf32>
    %65 = arith.addf %60, %64 : vector<8x64xf32>
    %66 = vector.extract_strided_slice %56 {offsets = [2, 0], sizes = [8, 64], strides = [1, 1]} : vector<10x64xf32> to vector<8x64xf32>
    %c2_36 = arith.constant 2 : index
    %c0_37 = arith.constant 0 : index
    %c0_38 = arith.constant 0 : index
    %67 = vector.load %arg9[%c2_36, %c0_37, %c0_38] : memref<3x64x64xf32, #tpu.memory_space<vmem>>, vector<1x64x64xf32>
    %68 = vector.shape_cast %67 : vector<1x64x64xf32> to vector<64x64xf32>
    %cst_39 = arith.constant dense<0.000000e+00> : vector<8x64xf32>
    %69 = tpu.matmul %66, %68, %cst_39 {dimension_numbers = #tpu.dot_dimension_numbers<[1], [0], [0], [1], [0, 0, 1, 1], [], []>} : vector<8x64xf32>, vector<64x64xf32>, vector<8x64xf32> -> vector<8x64xf32>
    %70 = arith.addf %65, %69 : vector<8x64xf32>
    %c0_40 = arith.constant 0 : index
    %c0_41 = arith.constant 0 : index
    %71 = vector.load %arg10[%c0_40, %c0_41] : memref<1x64xf32, #tpu.memory_space<vmem>>, vector<1x64xf32>
    %72 = vector.broadcast %71 : vector<1x64xf32> to vector<8x64xf32>
    %73 = arith.addf %70, %72 : vector<8x64xf32>
    %cst_42 = arith.constant 0.000000e+00 : f32
    %74 = vector.broadcast %cst_42 : f32 to vector<8x64xf32>
    %75 = arith.maximumf %73, %74 : vector<8x64xf32>
    %c0_43 = arith.constant 0 : index
    %c0_44 = arith.constant 0 : index
    %76 = vector.load %arg11[%c0_43, %c0_44] : memref<64x64xf32, #tpu.memory_space<vmem>>, vector<64x64xf32>
    %cst_45 = arith.constant dense<0.000000e+00> : vector<8x64xf32>
    %77 = tpu.matmul %75, %76, %cst_45 {dimension_numbers = #tpu.dot_dimension_numbers<[1], [0], [0], [1], [0, 0, 1, 1], [], []>} : vector<8x64xf32>, vector<64x64xf32>, vector<8x64xf32> -> vector<8x64xf32>
    %c0_46 = arith.constant 0 : index
    %c0_47 = arith.constant 0 : index
    %78 = vector.load %arg12[%c0_46, %c0_47] : memref<1x64xf32, #tpu.memory_space<vmem>>, vector<1x64xf32>
    %79 = vector.broadcast %78 : vector<1x64xf32> to vector<8x64xf32>
    %80 = arith.addf %77, %79 : vector<8x64xf32>
    %81 = arith.addf %80, %1 : vector<8x64xf32>
    %cst_48 = arith.constant 0.000000e+00 : f32
    %82 = vector.broadcast %cst_48 : f32 to vector<8x64xf32>
    %83 = arith.maximumf %81, %82 : vector<8x64xf32>
    %c0_49 = arith.constant 0 : index
    %c0_50 = arith.constant 0 : index
    %c0_51 = arith.constant 0 : index
    %84 = vector.load %arg13[%c0_49, %c0_50, %c0_51] : memref<1x8x64xf32, #tpu.memory_space<vmem>>, vector<1x8x64xf32>
    %85 = vector.shape_cast %84 : vector<1x8x64xf32> to vector<8x64xf32>
    %86 = vector.shape_cast %83 : vector<8x64xf32> to vector<1x8x64xf32>
    tpu.vector_store %arg13[%c0_49, %c0_50, %c0_51], %86 {strides = array<i32>} : memref<1x8x64xf32, #tpu.memory_space<vmem>>, vector<1x8x64xf32>,
    return
  }
  func.func @transform_0(%arg0: i32, %arg1: i32) -> (i32, i32, i32) {
    %c1_i32 = arith.constant 1 : i32
    %0 = arith.subi %arg1, %c1_i32 : i32
    %c0_i32 = arith.constant 0 : i32
    %1 = arith.maxsi %0, %c0_i32 : i32
    %c0_i32_0 = arith.constant 0 : i32
    %c0_i32_1 = arith.constant 0 : i32
    return %arg0, %1, %c0_i32_0 : i32, i32, i32
  }
  func.func @transform_1(%arg0: i32, %arg1: i32) -> (i32, i32, i32) {
    %c0_i32 = arith.constant 0 : i32
    %c0_i32_0 = arith.constant 0 : i32
    return %arg0, %arg1, %c0_i32 : i32, i32, i32
  }
  func.func @transform_2(%arg0: i32, %arg1: i32) -> (i32, i32, i32) {
    %c1_i32 = arith.constant 1 : i32
    %0 = arith.addi %arg1, %c1_i32 : i32
    %c1_i32_0 = arith.constant 1 : i32
    %1 = arith.minsi %0, %c1_i32_0 : i32
    %c0_i32 = arith.constant 0 : i32
    %c0_i32_1 = arith.constant 0 : i32
    return %arg0, %1, %c0_i32 : i32, i32, i32
  }
  func.func @transform_3(%arg0: i32, %arg1: i32) -> (i32, i32, i32) {
    %c0_i32 = arith.constant 0 : i32
    %c0_i32_0 = arith.constant 0 : i32
    %c0_i32_1 = arith.constant 0 : i32
    %c0_i32_2 = arith.constant 0 : i32
    return %c0_i32, %c0_i32_0, %c0_i32_1 : i32, i32, i32
  }
  func.func @transform_4(%arg0: i32, %arg1: i32) -> (i32, i32) {
    %c0_i32 = arith.constant 0 : i32
    %c0_i32_0 = arith.constant 0 : i32
    %c0_i32_1 = arith.constant 0 : i32
    return %c0_i32, %c0_i32_0 : i32, i32
  }
  func.func @transform_5(%arg0: i32, %arg1: i32) -> (i32, i32) {
    %c0_i32 = arith.constant 0 : i32
    %c0_i32_0 = arith.constant 0 : i32
    %c0_i32_1 = arith.constant 0 : i32
    return %c0_i32, %c0_i32_0 : i32, i32
  }
  func.func @transform_6(%arg0: i32, %arg1: i32) -> (i32, i32) {
    %c0_i32 = arith.constant 0 : i32
    %c0_i32_0 = arith.constant 0 : i32
    %c0_i32_1 = arith.constant 0 : i32
    return %c0_i32, %c0_i32_0 : i32, i32
  }
  func.func @transform_7(%arg0: i32, %arg1: i32) -> (i32, i32, i32) {
    %c0_i32 = arith.constant 0 : i32
    %c0_i32_0 = arith.constant 0 : i32
    %c0_i32_1 = arith.constant 0 : i32
    %c0_i32_2 = arith.constant 0 : i32
    return %c0_i32, %c0_i32_0, %c0_i32_1 : i32, i32, i32
  }
  func.func @transform_8(%arg0: i32, %arg1: i32) -> (i32, i32) {
    %c0_i32 = arith.constant 0 : i32
    %c0_i32_0 = arith.constant 0 : i32
    %c0_i32_1 = arith.constant 0 : i32
    return %c0_i32, %c0_i32_0 : i32, i32
  }
  func.func @transform_9(%arg0: i32, %arg1: i32) -> (i32, i32) {
    %c0_i32 = arith.constant 0 : i32
    %c0_i32_0 = arith.constant 0 : i32
    %c0_i32_1 = arith.constant 0 : i32
    return %c0_i32, %c0_i32_0 : i32, i32
  }
  func.func @transform_10(%arg0: i32, %arg1: i32) -> (i32, i32) {
    %c0_i32 = arith.constant 0 : i32
    %c0_i32_0 = arith.constant 0 : i32
    %c0_i32_1 = arith.constant 0 : i32
    return %c0_i32, %c0_i32_0 : i32, i32
  }
  func.func @transform_11(%arg0: i32, %arg1: i32) -> (i32, i32, i32) {
    %c0_i32 = arith.constant 0 : i32
    %c0_i32_0 = arith.constant 0 : i32
    return %arg0, %arg1, %c0_i32 : i32, i32, i32
  }
}

</mosaic_0001>

<llo_original>
// kernel: tpu_custom_call.1
$region0: #{tpu_custom_call.1}
  #allocation0 [shape = 'u32[]', space=smem, size = 0x4, offset = 0x4, fixed_abs, tag = 'smem constant byte address 0x4 - core index']
  #allocation1 [shape = 'u32[144,128]{1,0:T(1,128)}', space=vmem, size = 0x12000, scoped, tag = 'internal scratch']
  %s0 = inlined_call_operand.hbm [shape: f32[2,16,64], index: 0, kind: input, shape index: {}]
  %s1 = inlined_call_operand.hbm [shape: f32[2,16,64], index: 1, kind: input, shape index: {}]
  %s2 = inlined_call_operand.hbm [shape: f32[2,16,64], index: 2, kind: input, shape index: {}]
  %s3 = inlined_call_operand.hbm [shape: f32[3,64,64], index: 3, kind: input, shape index: {}]
  %s4 = inlined_call_operand.vmem [shape: f32[1,64], index: 4, kind: input, shape index: {}]
  %s5 = inlined_call_operand.hbm [shape: f32[64,64], index: 5, kind: input, shape index: {}]
  %s6 = inlined_call_operand.vmem [shape: f32[1,64], index: 6, kind: input, shape index: {}]
  %s7 = inlined_call_operand.hbm [shape: f32[3,64,64], index: 7, kind: input, shape index: {}]
  %s8 = inlined_call_operand.vmem [shape: f32[1,64], index: 8, kind: input, shape index: {}]
  %s9 = inlined_call_operand.hbm [shape: f32[64,64], index: 9, kind: input, shape index: {}]
  %s10 = inlined_call_operand.vmem [shape: f32[1,64], index: 10, kind: input, shape index: {}]
  %s11 = inlined_call_operand.hbm [shape: f32[2,16,64], index: 11, kind: output, shape index: {}]
  %s12 = sld [smem:[#allocation0]]
  $region105: #{tpu_custom_call.1} parent=0
    _
  %s14 = ssub.s32 1, %s12
  %s15 = scalar_select 0, %s14, %s12
  $region1: #{tpu_custom_call.1} parent=0
    #allocation2 [shape = 'u8[8192]{0}', space=vmem, size = 0x2000, scoped, tag = 'input window, operand 0']
    #allocation3 [shape = 's32[2]{0}', space=sflag, size = 0x8, scoped, tag = 'scoped memory for tpu_custom_call.1']
    #allocation4 [shape = 's32[2]{0}', space=sflag, size = 0x8, scoped, tag = 'scoped memory for tpu_custom_call.1']
    #allocation5 [shape = 'u8[8192]{0}', space=vmem, size = 0x2000, scoped, tag = 'input window, operand 1']
    #allocation6 [shape = 's32[2]{0}', space=sflag, size = 0x8, scoped, tag = 'scoped memory for tpu_custom_call.1']
    #allocation7 [shape = 'u8[8192]{0}', space=vmem, size = 0x2000, scoped, tag = 'input window, operand 2']
    #allocation8 [shape = 'u8[98304]{0}', space=vmem, size = 0x18000, scoped, tag = 'input window, operand 3, single buffered']
    #allocation9 [shape = 's32[1]{0}', space=sflag, size = 0x4, scoped, tag = 'scoped memory for tpu_custom_call.1']
    #allocation10 [shape = 'u8[32768]{0}', space=vmem, size = 0x8000, scoped, tag = 'input window, operand 5, single buffered']
    #allocation11 [shape = 'u8[98304]{0}', space=vmem, size = 0x18000, scoped, tag = 'input window, operand 7, single buffered']
    #allocation12 [shape = 's32[1]{0}', space=sflag, size = 0x4, scoped, tag = 'scoped memory for tpu_custom_call.1']
    #allocation13 [shape = 'u8[32768]{0}', space=vmem, size = 0x8000, scoped, tag = 'input window, operand 9, single buffered']
    #allocation14 [shape = 'u8[8192]{0}', space=vmem, size = 0x2000, scoped, tag = 'output window, operand 0']
    %16 = vsyncpa [#allocation3], 0
    %s17 = scalar_lea.sflag [#allocation3], 1
    %18 = vsyncpa %s17, 0
    %19 = vsyncpa [#allocation6], 0
    %s20 = scalar_lea.sflag [#allocation6], 1
    %21 = vsyncpa %s20, 0
    %22 = vsyncpa [#allocation9], 0
    %23 = vsyncpa [#allocation12], 0
    %24 = vsyncpa [#allocation4], 0
    %s25 = scalar_lea.sflag [#allocation4], 1
    %26 = vsyncpa %s25, 0
    loop: start=0, step=1, limit=6
    $region2: #{tpu_custom_call.1} parent=1 // loop_pre_header
      _
    $region3: #{tpu_custom_call.1} parent=1 // loop_header
      %s28 = sphi 0, %s32
      %p29 = scmp.ge.s32.totalorder %s28, 6
      %s35 = sphi 0, %s47
      %s36 = sphi 0, %s43
      %s37 = sphi 0, %s35
      %s38 = sphi 0, %s36
      %s39 = sphi 0, %s37
      %s40 = sphi 0, %s38
      %s58 = sphi 0, %s60
      %s61 = sphi 0, %s58
      %s62 = sphi 0, %s61
      %s78 = sphi 0, %s62
      %s86 = sphi 0, %s88
      %s89 = sphi 0, %s86
      %s90 = sphi 0, %s89
      %s106 = sphi 0, %s90
      %s120 = sphi 0, %s122
      %s123 = sphi 0, %s120
      %s124 = sphi 0, %s123
      %s140 = sphi 0, %s124
      %s144 = sphi 0, %s144
      %s146 = sphi 0, %s144
      %s147 = sphi 0, %s146
      %s161 = sphi 0, %s147
      %s165 = sphi 0, %s165
      %s167 = sphi 0, %s165
      %s168 = sphi 0, %s167
      %s182 = sphi 0, %s168
      %s186 = sphi 0, %s186
      %s188 = sphi 0, %s186
      %s189 = sphi 0, %s188
      %s203 = sphi 0, %s189
      %s207 = sphi 0, %s207
      %s209 = sphi 0, %s207
      %s210 = sphi 0, %s209
      %s224 = sphi 0, %s210
      %s228 = sphi 0, %s228
      %s230 = sphi 0, %s228
      %s231 = sphi 0, %s230
      %s245 = sphi 0, %s231
      %s249 = sphi 0, %s249
      %s251 = sphi 0, %s249
      %s252 = sphi 0, %s251
      %s266 = sphi 0, %s252
      %s270 = sphi 0, %s270
      %s272 = sphi 0, %s270
      %s273 = sphi 0, %s272
      %s287 = sphi 0, %s273
      %s291 = sphi 0, %s291
      %s293 = sphi 0, %s291
      %s294 = sphi 0, %s293
      %s308 = sphi 0, %s294
      %s316 = sphi 0, %s318
      %s319 = sphi 0, %s316
      %s320 = sphi 0, %s319
      %s336 = sphi 0, %s320
    $region4: #{tpu_custom_call.1} parent=1 // loop_header_branch
      %31 = sbr.rel (%p29) target = $region8
    $region5: #{tpu_custom_call.1} parent=1 // loop_body
      %s33 = ssub.s32 %s28, 1
      %s34 = ssub.s32 %s28, 2
      %s41 = sadd.s32 1, %s36
      %p42 = scmp.ge.s32.totalorder %s41, 2
      %s43 = scalar_select %p42, 0, %s41
      %s44 = sadd.s32 1, %s35
      %s45 = scalar_select %p42, %s44, %s35
      %p46 = scmp.ge.s32.totalorder %s45, 2
      %s47 = scalar_select %p46, 0, %s45
      %s48 = ssub.s32 %s36, 1
      %p49 = scmp.gt.s32.totalorder %s48, 0
      %s50 = scalar_select %p49, %s48, 0
      %s51 = ssub.s32 %s43, 1
      %p52 = scmp.gt.s32.totalorder %s51, 0
      %s53 = scalar_select %p52, %s51, 0
      %s54 = ssub.s32 %s35, %s47
      %s55 = ssub.s32 %s50, %s53
      %s56 = sor.u32 %s54, %s55
      %p57 = scmp.eq.s32.totalorder %s56, 0
      %s59 = sadd.s32 %s58, 1
      %s60 = scalar_select %p57, %s58, %s59
      %p63 = pneg %p57
      %p64 = scmp.eq.s32.totalorder %s28, 3
      %p65 = por %p63, %p64
      %p66 = scmp.ne.s32.totalorder %s58, %s61
      %p67 = scmp.eq.s32.totalorder %s28, 0
      %p68 = por %p66, %p67
      %p69 = scmp.ne.s32.totalorder %s58, %s61
      %p70 = scmp.eq.s32.totalorder %s33, 3
      %p71 = por %p69, %p70
      %p72 = scmp.ne.s32.totalorder %s61, %s62
      %p73 = scmp.eq.s32.totalorder %s33, 0
      %p74 = por %p72, %p73
      %p75 = scmp.ne.s32.totalorder %s61, %s62
      %p76 = scmp.eq.s32.totalorder %s34, 3
      %p77 = por %p75, %p76
      %p79 = scmp.ne.s32.totalorder %s62, %s78
      %p80 = scmp.eq.s32.totalorder %s34, 0
      %p81 = por %p79, %p80
      %s82 = ssub.s32 %s35, %s47
      %s83 = ssub.s32 %s36, %s43
      %s84 = sor.u32 %s82, %s83
      %p85 = scmp.eq.s32.totalorder %s84, 0
      %s87 = sadd.s32 %s86, 1
      %s88 = scalar_select %p85, %s86, %s87
      %p91 = pneg %p85
      %p92 = scmp.eq.s32.totalorder %s28, 3
      %p93 = por %p91, %p92
      %p94 = scmp.ne.s32.totalorder %s86, %s89
      %p95 = scmp.eq.s32.totalorder %s28, 0
      %p96 = por %p94, %p95
      %p97 = scmp.ne.s32.totalorder %s86, %s89
      %p98 = scmp.eq.s32.totalorder %s33, 3
      %p99 = por %p97, %p98
      %p100 = scmp.ne.s32.totalorder %s89, %s90
      %p101 = scmp.eq.s32.totalorder %s33, 0
      %p102 = por %p100, %p101
      %p103 = scmp.ne.s32.totalorder %s89, %s90
      %p104 = scmp.eq.s32.totalorder %s34, 3
      %p105 = por %p103, %p104
      %p107 = scmp.ne.s32.totalorder %s90, %s106
      %p108 = scmp.eq.s32.totalorder %s34, 0
      %p109 = por %p107, %p108
      %s110 = sadd.s32 %s36, 1
      %p111 = scmp.lt.s32.totalorder %s110, 1
      %s112 = scalar_select %p111, %s110, 1
      %s113 = sadd.s32 %s43, 1
      %p114 = scmp.lt.s32.totalorder %s113, 1
      %s115 = scalar_select %p114, %s113, 1
      %s116 = ssub.s32 %s35, %s47
      %s117 = ssub.s32 %s112, %s115
      %s118 = sor.u32 %s116, %s117
      %p119 = scmp.eq.s32.totalorder %s118, 0
      %s121 = sadd.s32 %s120, 1
      %s122 = scalar_select %p119, %s120, %s121
      %p125 = pneg %p119
      %p126 = scmp.eq.s32.totalorder %s28, 3
      %p127 = por %p125, %p126
      %p128 = scmp.ne.s32.totalorder %s120, %s123
      %p129 = scmp.eq.s32.totalorder %s28, 0
      %p130 = por %p128, %p129
      %p131 = scmp.ne.s32.totalorder %s120, %s123
      %p132 = scmp.eq.s32.totalorder %s33, 3
      %p133 = por %p131, %p132
      %p134 = scmp.ne.s32.totalorder %s123, %s124
      %p135 = scmp.eq.s32.totalorder %s33, 0
      %p136 = por %p134, %p135
      %p137 = scmp.ne.s32.totalorder %s123, %s124
      %p138 = scmp.eq.s32.totalorder %s34, 3
      %p139 = por %p137, %p138
      %p141 = scmp.ne.s32.totalorder %s124, %s140
      %p142 = scmp.eq.s32.totalorder %s34, 0
      %p143 = por %p141, %p142
      %s145 = sadd.s32 %s144, 1
      %p148 = scmp.eq.s32.totalorder %s28, 3
      %p149 = scmp.ne.s32.totalorder %s144, %s146
      %p150 = scmp.eq.s32.totalorder %s28, 0
      %p151 = por %p149, %p150
      %p152 = scmp.ne.s32.totalorder %s144, %s146
      %p153 = scmp.eq.s32.totalorder %s33, 3
      %p154 = por %p152, %p153
      %p155 = scmp.ne.s32.totalorder %s146, %s147
      %p156 = scmp.eq.s32.totalorder %s33, 0
      %p157 = por %p155, %p156
      %p158 = scmp.ne.s32.totalorder %s146, %s147
      %p159 = scmp.eq.s32.totalorder %s34, 3
      %p160 = por %p158, %p159
      %p162 = scmp.ne.s32.totalorder %s147, %s161
      %p163 = scmp.eq.s32.totalorder %s34, 0
      %p164 = por %p162, %p163
      %s166 = sadd.s32 %s165, 1
      %p169 = scmp.eq.s32.totalorder %s28, 3
      %p170 = scmp.ne.s32.totalorder %s165, %s167
      %p171 = scmp.eq.s32.totalorder %s28, 0
      %p172 = por %p170, %p171
      %p173 = scmp.ne.s32.totalorder %s165, %s167
      %p174 = scmp.eq.s32.totalorder %s33, 3
      %p175 = por %p173, %p174
      %p176 = scmp.ne.s32.totalorder %s167, %s168
      %p177 = scmp.eq.s32.totalorder %s33, 0
      %p178 = por %p176, %p177
      %p179 = scmp.ne.s32.totalorder %s167, %s168
      %p180 = scmp.eq.s32.totalorder %s34, 3
      %p181 = por %p179, %p180
      %p183 = scmp.ne.s32.totalorder %s168, %s182
      %p184 = scmp.eq.s32.totalorder %s34, 0
      %p185 = por %p183, %p184
      %s187 = sadd.s32 %s186, 1
      %p190 = scmp.eq.s32.totalorder %s28, 3
      %p191 = scmp.ne.s32.totalorder %s186, %s188
      %p192 = scmp.eq.s32.totalorder %s28, 0
      %p193 = por %p191, %p192
      %p194 = scmp.ne.s32.totalorder %s186, %s188
      %p195 = scmp.eq.s32.totalorder %s33, 3
      %p196 = por %p194, %p195
      %p197 = scmp.ne.s32.totalorder %s188, %s189
      %p198 = scmp.eq.s32.totalorder %s33, 0
      %p199 = por %p197, %p198
      %p200 = scmp.ne.s32.totalorder %s188, %s189
      %p201 = scmp.eq.s32.totalorder %s34, 3
      %p202 = por %p200, %p201
      %p204 = scmp.ne.s32.totalorder %s189, %s203
      %p205 = scmp.eq.s32.totalorder %s34, 0
      %p206 = por %p204, %p205
      %s208 = sadd.s32 %s207, 1
      %p211 = scmp.eq.s32.totalorder %s28, 3
      %p212 = scmp.ne.s32.totalorder %s207, %s209
      %p213 = scmp.eq.s32.totalorder %s28, 0
      %p214 = por %p212, %p213
      %p215 = scmp.ne.s32.totalorder %s207, %s209
      %p216 = scmp.eq.s32.totalorder %s33, 3
      %p217 = por %p215, %p216
      %p218 = scmp.ne.s32.totalorder %s209, %s210
      %p219 = scmp.eq.s32.totalorder %s33, 0
      %p220 = por %p218, %p219
      %p221 = scmp.ne.s32.totalorder %s209, %s210
      %p222 = scmp.eq.s32.totalorder %s34, 3
      %p223 = por %p221, %p222
      %p225 = scmp.ne.s32.totalorder %s210, %s224
      %p226 = scmp.eq.s32.totalorder %s34, 0
      %p227 = por %p225, %p226
      %s229 = sadd.s32 %s228, 1
      %p232 = scmp.eq.s32.totalorder %s28, 3
      %p233 = scmp.ne.s32.totalorder %s228, %s230
      %p234 = scmp.eq.s32.totalorder %s28, 0
      %p235 = por %p233, %p234
      %p236 = scmp.ne.s32.totalorder %s228, %s230
      %p237 = scmp.eq.s32.totalorder %s33, 3
      %p238 = por %p236, %p237
      %p239 = scmp.ne.s32.totalorder %s230, %s231
      %p240 = scmp.eq.s32.totalorder %s33, 0
      %p241 = por %p239, %p240
      %p242 = scmp.ne.s32.totalorder %s230, %s231
      %p243 = scmp.eq.s32.totalorder %s34, 3
      %p244 = por %p242, %p243
      %p246 = scmp.ne.s32.totalorder %s231, %s245
      %p247 = scmp.eq.s32.totalorder %s34, 0
      %p248 = por %p246, %p247
      %s250 = sadd.s32 %s249, 1
      %p253 = scmp.eq.s32.totalorder %s28, 3
      %p254 = scmp.ne.s32.totalorder %s249, %s251
      %p255 = scmp.eq.s32.totalorder %s28, 0
      %p256 = por %p254, %p255
      %p257 = scmp.ne.s32.totalorder %s249, %s251
      %p258 = scmp.eq.s32.totalorder %s33, 3
      %p259 = por %p257, %p258
      %p260 = scmp.ne.s32.totalorder %s251, %s252
      %p261 = scmp.eq.s32.totalorder %s33, 0
      %p262 = por %p260, %p261
      %p263 = scmp.ne.s32.totalorder %s251, %s252
      %p264 = scmp.eq.s32.totalorder %s34, 3
      %p265 = por %p263, %p264
      %p267 = scmp.ne.s32.totalorder %s252, %s266
      %p268 = scmp.eq.s32.totalorder %s34, 0
      %p269 = por %p267, %p268
      %s271 = sadd.s32 %s270, 1
      %p274 = scmp.eq.s32.totalorder %s28, 3
      %p275 = scmp.ne.s32.totalorder %s270, %s272
      %p276 = scmp.eq.s32.totalorder %s28, 0
      %p277 = por %p275, %p276
      %p278 = scmp.ne.s32.totalorder %s270, %s272
      %p279 = scmp.eq.s32.totalorder %s33, 3
      %p280 = por %p278, %p279
      %p281 = scmp.ne.s32.totalorder %s272, %s273
      %p282 = scmp.eq.s32.totalorder %s33, 0
      %p283 = por %p281, %p282
      %p284 = scmp.ne.s32.totalorder %s272, %s273
      %p285 = scmp.eq.s32.totalorder %s34, 3
      %p286 = por %p284, %p285
      %p288 = scmp.ne.s32.totalorder %s273, %s287
      %p289 = scmp.eq.s32.totalorder %s34, 0
      %p290 = por %p288, %p289
      %s292 = sadd.s32 %s291, 1
      %p295 = scmp.eq.s32.totalorder %s28, 3
      %p296 = scmp.ne.s32.totalorder %s291, %s293
      %p297 = scmp.eq.s32.totalorder %s28, 0
      %p298 = por %p296, %p297
      %p299 = scmp.ne.s32.totalorder %s291, %s293
      %p300 = scmp.eq.s32.totalorder %s33, 3
      %p301 = por %p299, %p300
      %p302 = scmp.ne.s32.totalorder %s293, %s294
      %p303 = scmp.eq.s32.totalorder %s33, 0
      %p304 = por %p302, %p303
      %p305 = scmp.ne.s32.totalorder %s293, %s294
      %p306 = scmp.eq.s32.totalorder %s34, 3
      %p307 = por %p305, %p306
      %p309 = scmp.ne.s32.totalorder %s294, %s308
      %p310 = scmp.eq.s32.totalorder %s34, 0
      %p311 = por %p309, %p310
      %s312 = ssub.s32 %s35, %s47
      %s313 = ssub.s32 %s36, %s43
      %s314 = sor.u32 %s312, %s313
      %p315 = scmp.eq.s32.totalorder %s314, 0
      %s317 = sadd.s32 %s316, 1
      %s318 = scalar_select %p315, %s316, %s317
      %p321 = pneg %p315
      %p322 = scmp.eq.s32.totalorder %s28, 3
      %p323 = por %p321, %p322
      %p324 = scmp.ne.s32.totalorder %s316, %s319
      %p325 = scmp.eq.s32.totalorder %s28, 0
      %p326 = por %p324, %p325
      %p327 = scmp.ne.s32.totalorder %s316, %s319
      %p328 = scmp.eq.s32.totalorder %s33, 3
      %p329 = por %p327, %p328
      %p330 = scmp.ne.s32.totalorder %s319, %s320
      %p331 = scmp.eq.s32.totalorder %s33, 0
      %p332 = por %p330, %p331
      %p333 = scmp.ne.s32.totalorder %s319, %s320
      %p334 = scmp.eq.s32.totalorder %s34, 3
      %p335 = por %p333, %p334
      %p337 = scmp.ne.s32.totalorder %s320, %s336
      %p338 = scmp.eq.s32.totalorder %s34, 0
      %p339 = por %p337, %p338
      %p340 = scmp.le.s32.totalorder 1, %s28
      %p341 = scmp.lt.s32.totalorder %s28, 5
      %p342 = pnand %p340, %p341
      %p343 = pneg %p342
      // Predicated region
      $region9: #{tpu_custom_call.1} parent=5 // pred_check
        _
      $region10: #{tpu_custom_call.1} parent=5 // pred_check_branch
        %345 = sbr.rel (%p342) target = $region12
      $region11: #{tpu_custom_call.1} parent=5 // pred_region
        %s346 = ssub.s32 %s28, 1
        // Predicated region
        $region13: #{tpu_custom_call.1} parent=11 // pred_check
          %p347 = pneg %p157
        $region14: #{tpu_custom_call.1} parent=11 // pred_check_branch
          %349 = sbr.rel (%p347) target = $region16
        $region15: #{tpu_custom_call.1} parent=11 // pred_region
          %s351 = ssub.s32 3072, 3072
          %352 = vsyncadd [#allocation9], %s351
          %s353 = sshll.u32 [#allocation8], 4
          %s354 = int_to_ptr.vmem [resolvable:$true] %s353
          %359 = dma.hbm_to_vmem [thread:$0]  %s3, 3072, %s354, [#allocation9], 128, 128, 8
        $region16: #{tpu_custom_call.1} parent=11 // pred_fallthru
          _
        // Predicated region
        $region17: #{tpu_custom_call.1} parent=11 // pred_check
          %p360 = pneg %p178
        $region18: #{tpu_custom_call.1} parent=11 // pred_check_branch
          %362 = sbr.rel (%p360) target = $region20
        $region19: #{tpu_custom_call.1} parent=11 // pred_region
          _
        $region20: #{tpu_custom_call.1} parent=11 // pred_fallthru
          _
        // Predicated region
        $region21: #{tpu_custom_call.1} parent=11 // pred_check
          %p363 = pneg %p199
        $region22: #{tpu_custom_call.1} parent=11 // pred_check_branch
          %365 = sbr.rel (%p363) target = $region24
        $region23: #{tpu_custom_call.1} parent=11 // pred_region
          %s367 = ssub.s32 1024, 1024
          %368 = vsyncadd [#allocation9], %s367
          %s369 = sshll.u32 [#allocation10], 4
          %s370 = int_to_ptr.vmem [resolvable:$true] %s369
          %375 = dma.hbm_to_vmem [thread:$0]  %s5, 1024, %s370, [#allocation9], 128, 128, 8
        $region24: #{tpu_custom_call.1} parent=11 // pred_fallthru
          _
        // Predicated region
        $region25: #{tpu_custom_call.1} parent=11 // pred_check
          %p376 = pneg %p220
        $region26: #{tpu_custom_call.1} parent=11 // pred_check_branch
          %378 = sbr.rel (%p376) target = $region28
        $region27: #{tpu_custom_call.1} parent=11 // pred_region
          _
        $region28: #{tpu_custom_call.1} parent=11 // pred_fallthru
          _
        // Predicated region
        $region29: #{tpu_custom_call.1} parent=11 // pred_check
          %p379 = pneg %p241
        $region30: #{tpu_custom_call.1} parent=11 // pred_check_branch
          %381 = sbr.rel (%p379) target = $region32
        $region31: #{tpu_custom_call.1} parent=11 // pred_region
          %s383 = ssub.s32 3072, 3072
          %384 = vsyncadd [#allocation12], %s383
          %s385 = sshll.u32 [#allocation11], 4
          %s386 = int_to_ptr.vmem [resolvable:$true] %s385
          %391 = dma.hbm_to_vmem [thread:$0]  %s7, 3072, %s386, [#allocation12], 128, 128, 8
        $region32: #{tpu_custom_call.1} parent=11 // pred_fallthru
          _
        // Predicated region
        $region33: #{tpu_custom_call.1} parent=11 // pred_check
          %p392 = pneg %p262
        $region34: #{tpu_custom_call.1} parent=11 // pred_check_branch
          %394 = sbr.rel (%p392) target = $region36
        $region35: #{tpu_custom_call.1} parent=11 // pred_region
          _
        $region36: #{tpu_custom_call.1} parent=11 // pred_fallthru
          _
        // Predicated region
        $region37: #{tpu_custom_call.1} parent=11 // pred_check
          %p395 = pneg %p283
        $region38: #{tpu_custom_call.1} parent=11 // pred_check_branch
          %397 = sbr.rel (%p395) target = $region40
        $region39: #{tpu_custom_call.1} parent=11 // pred_region
          %s399 = ssub.s32 1024, 1024
          %400 = vsyncadd [#allocation12], %s399
          %s401 = sshll.u32 [#allocation13], 4
          %s402 = int_to_ptr.vmem [resolvable:$true] %s401
          %407 = dma.hbm_to_vmem [thread:$0]  %s9, 1024, %s402, [#allocation12], 128, 128, 8
        $region40: #{tpu_custom_call.1} parent=11 // pred_fallthru
          _
        // Predicated region
        $region41: #{tpu_custom_call.1} parent=11 // pred_check
          %p408 = pneg %p304
        $region42: #{tpu_custom_call.1} parent=11 // pred_check_branch
          %410 = sbr.rel (%p408) target = $region44
        $region43: #{tpu_custom_call.1} parent=11 // pred_region
          _
        $region44: #{tpu_custom_call.1} parent=11 // pred_fallthru
          _
      $region12: #{tpu_custom_call.1} parent=5 // pred_fallthru
        _
      %p411 = scmp.lt.s32.totalorder %s28, 4
      // Predicated region
      $region45: #{tpu_custom_call.1} parent=5 // pred_check
        %p412 = pneg %p411
      $region46: #{tpu_custom_call.1} parent=5 // pred_check_branch
        %414 = sbr.rel (%p412) target = $region48
      $region47: #{tpu_custom_call.1} parent=5 // pred_region
        // Predicated region
        $region49: #{tpu_custom_call.1} parent=47 // pred_check
          %p415 = pneg %p68
        $region50: #{tpu_custom_call.1} parent=47 // pred_check_branch
          %417 = sbr.rel (%p415) target = $region52
        $region51: #{tpu_custom_call.1} parent=47 // pred_region
          %s418 = sand.u32 %s58, 1
          %s419 = scalar_lea.sflag [#allocation3], %s418
          %s420 = sand.u32 %s58, 1
          %s421 = smul.addr %s420, 8
          %s422 = scalar_lea.vmem [#allocation2], %s421
          %s423 = ssub.s32 %s36, 1
          %p424 = scmp.gt.s32.totalorder %s423, 0
          %s425 = scalar_select %p424, %s423, 0
          %s427 = ssub.s32 128, 128
          %428 = vsyncadd %s419, %s427
          %s429 = smul.addr %s35, 2
          %s430 = sadd.s32 %s425, %s429
          %s431 = smul.addr %s430, 128
          %s432 = scalar_lea.hbm %s0, %s431
          %s434 = sshll.u32 %s422, 4
          %s435 = int_to_ptr.vmem [resolvable:$true] %s434
          %437 = dma.hbm_to_vmem [thread:$0]  %s432, 128, %s435, %s419
        $region52: #{tpu_custom_call.1} parent=47 // pred_fallthru
          _
        // Predicated region
        $region53: #{tpu_custom_call.1} parent=47 // pred_check
          %p438 = pneg %p96
        $region54: #{tpu_custom_call.1} parent=47 // pred_check_branch
          %440 = sbr.rel (%p438) target = $region56
        $region55: #{tpu_custom_call.1} parent=47 // pred_region
          %s441 = sand.u32 %s28, 1
          %s442 = scalar_lea.sflag [#allocation6], %s441
          %s443 = sand.u32 %s86, 1
          %s444 = smul.addr %s443, 8
          %s445 = scalar_lea.vmem [#allocation5], %s444
          %s447 = ssub.s32 128, 128
          %448 = vsyncadd %s442, %s447
          %s449 = smul.addr %s35, 2
          %s450 = sadd.s32 %s36, %s449
          %s451 = smul.addr %s450, 128
          %s452 = scalar_lea.hbm %s1, %s451
          %s454 = sshll.u32 %s445, 4
          %s455 = int_to_ptr.vmem [resolvable:$true] %s454
          %457 = dma.hbm_to_vmem [thread:$0]  %s452, 128, %s455, %s442
        $region56: #{tpu_custom_call.1} parent=47 // pred_fallthru
          _
        // Predicated region
        $region57: #{tpu_custom_call.1} parent=47 // pred_check
          %p458 = pneg %p130
        $region58: #{tpu_custom_call.1} parent=47 // pred_check_branch
          %460 = sbr.rel (%p458) target = $region60
        $region59: #{tpu_custom_call.1} parent=47 // pred_region
          %s461 = sand.u32 %s28, 1
          %s462 = scalar_lea.sflag [#allocation6], %s461
          %s463 = sand.u32 %s120, 1
          %s464 = smul.addr %s463, 8
          %s465 = scalar_lea.vmem [#allocation7], %s464
          %s466 = sadd.s32 %s36, 1
          %p467 = scmp.lt.s32.totalorder %s466, 1
          %s468 = scalar_select %p467, %s466, 1
          %s470 = ssub.s32 128, 128
          %471 = vsyncadd %s462, %s470
          %s472 = smul.addr %s35, 2
          %s473 = sadd.s32 %s468, %s472
          %s474 = smul.addr %s473, 128
          %s475 = scalar_lea.hbm %s2, %s474
          %s477 = sshll.u32 %s465, 4
          %s478 = int_to_ptr.vmem [resolvable:$true] %s477
          %480 = dma.hbm_to_vmem [thread:$0]  %s475, 128, %s478, %s462
        $region60: #{tpu_custom_call.1} parent=47 // pred_fallthru
          _
      $region48: #{tpu_custom_call.1} parent=5 // pred_fallthru
        _
      %p481 = scmp.le.s32.totalorder 1, %s28
      %p482 = scmp.lt.s32.totalorder %s28, 5
      %p483 = pnand %p481, %p482
      %p484 = pneg %p483
      // Predicated region
      $region61: #{tpu_custom_call.1} parent=5 // pred_check
        _
      $region62: #{tpu_custom_call.1} parent=5 // pred_check_branch
        %486 = sbr.rel (%p483) target = $region64
      $region63: #{tpu_custom_call.1} parent=5 // pred_region
        %s487 = ssub.s32 %s28, 1
        %s488 = sand.u32 %s61, 1
        %s489 = scalar_lea.sflag [#allocation3], %s488
        %s490 = sand.u32 %s61, 1
        %s491 = smul.addr %s490, 8
        %s492 = scalar_lea.vmem [#allocation2], %s491
        // Predicated region
        $region65: #{tpu_custom_call.1} parent=63 // pred_check
          %p493 = pneg %p74
        $region66: #{tpu_custom_call.1} parent=63 // pred_check_branch
          %495 = sbr.rel (%p493) target = $region68
        $region67: #{tpu_custom_call.1} parent=63 // pred_region
          %496 = dma.done %s489, 128
        $region68: #{tpu_custom_call.1} parent=63 // pred_fallthru
          _
        %s497 = sand.u32 %s33, 1
        %s498 = scalar_lea.sflag [#allocation6], %s497
        %s499 = sand.u32 %s89, 1
        %s500 = smul.addr %s499, 8
        %s501 = scalar_lea.vmem [#allocation5], %s500
        // Predicated region
        $region69: #{tpu_custom_call.1} parent=63 // pred_check
          %p502 = pneg %p102
        $region70: #{tpu_custom_call.1} parent=63 // pred_check_branch
          %504 = sbr.rel (%p502) target = $region72
        $region71: #{tpu_custom_call.1} parent=63 // pred_region
          %505 = dma.done %s498, 128
        $region72: #{tpu_custom_call.1} parent=63 // pred_fallthru
          _
        %s506 = sand.u32 %s33, 1
        %s507 = scalar_lea.sflag [#allocation6], %s506
        %s508 = sand.u32 %s123, 1
        %s509 = smul.addr %s508, 8
        %s510 = scalar_lea.vmem [#allocation7], %s509
        // Predicated region
        $region73: #{tpu_custom_call.1} parent=63 // pred_check
          %p511 = pneg %p136
        $region74: #{tpu_custom_call.1} parent=63 // pred_check_branch
          %513 = sbr.rel (%p511) target = $region76
        $region75: #{tpu_custom_call.1} parent=63 // pred_region
          %514 = dma.done %s507, 128
        $region76: #{tpu_custom_call.1} parent=63 // pred_fallthru
          _
        // Predicated region
        $region77: #{tpu_custom_call.1} parent=63 // pred_check
          %p515 = pneg %p157
        $region78: #{tpu_custom_call.1} parent=63 // pred_check_branch
          %517 = sbr.rel (%p515) target = $region80
        $region79: #{tpu_custom_call.1} parent=63 // pred_region
          %518 = dma.done [#allocation9], 3072
        $region80: #{tpu_custom_call.1} parent=63 // pred_fallthru
          _
        // Predicated region
        $region81: #{tpu_custom_call.1} parent=63 // pred_check
          %p519 = pneg %p199
        $region82: #{tpu_custom_call.1} parent=63 // pred_check_branch
          %521 = sbr.rel (%p519) target = $region84
        $region83: #{tpu_custom_call.1} parent=63 // pred_region
          %522 = dma.done [#allocation9], 1024
        $region84: #{tpu_custom_call.1} parent=63 // pred_fallthru
          _
        // Predicated region
        $region85: #{tpu_custom_call.1} parent=63 // pred_check
          %p523 = pneg %p241
        $region86: #{tpu_custom_call.1} parent=63 // pred_check_branch
          %525 = sbr.rel (%p523) target = $region88
        $region87: #{tpu_custom_call.1} parent=63 // pred_region
          %526 = dma.done [#allocation12], 3072
        $region88: #{tpu_custom_call.1} parent=63 // pred_fallthru
          _
        // Predicated region
        $region89: #{tpu_custom_call.1} parent=63 // pred_check
          %p527 = pneg %p283
        $region90: #{tpu_custom_call.1} parent=63 // pred_check_branch
          %529 = sbr.rel (%p527) target = $region92
        $region91: #{tpu_custom_call.1} parent=63 // pred_region
          %530 = dma.done [#allocation12], 1024
        $region92: #{tpu_custom_call.1} parent=63 // pred_fallthru
          _
        %s531 = sand.u32 %s61, 1
        %s532 = scalar_lea.sflag [#allocation3], %s531
        %s533 = sand.u32 %s61, 1
        %s534 = smul.addr %s533, 8
        %s535 = scalar_lea.vmem [#allocation2], %s534
        %p536 = pneg %p74
        %p537 = pneg %p71
        %s538 = sand.u32 %s33, 1
        %s539 = scalar_lea.sflag [#allocation6], %s538
        %s540 = sand.u32 %s89, 1
        %s541 = smul.addr %s540, 8
        %s542 = scalar_lea.vmem [#allocation5], %s541
        %p543 = pneg %p102
        %p544 = pneg %p99
        %s545 = sand.u32 %s33, 1
        %s546 = scalar_lea.sflag [#allocation6], %s545
        %s547 = sand.u32 %s123, 1
        %s548 = smul.addr %s547, 8
        %s549 = scalar_lea.vmem [#allocation7], %s548
        %p550 = pneg %p136
        %p551 = pneg %p133
        %p552 = pneg %p157
        %p553 = pneg %p154
        %p554 = pneg %p178
        %p555 = pneg %p175
        %p556 = pneg %p199
        %p557 = pneg %p196
        %p558 = pneg %p220
        %p559 = pneg %p217
        %p560 = pneg %p241
        %p561 = pneg %p238
        %p562 = pneg %p262
        %p563 = pneg %p259
        %p564 = pneg %p283
        %p565 = pneg %p280
        %p566 = pneg %p304
        %p567 = pneg %p301
        %p568 = pneg %p332
        %p569 = pneg %p329
        %s570 = sand.u32 %s319, 1
        %s571 = scalar_lea.sflag [#allocation4], %s570
        %s572 = sand.u32 %s319, 1
        %s573 = smul.addr %s572, 8
        %s574 = scalar_lea.vmem [#allocation14], %s573
        %s575 = ssub.s32 %s38, 1
        %p576 = scmp.gt.s32.totalorder %s575, 0
        %s577 = scalar_select %p576, %s575, 0
        %s578 = sadd.s32 %s38, 1
        %p579 = scmp.lt.s32.totalorder %s578, 1
        %s580 = scalar_select %p579, %s578, 1
        %v581 = vld [vmem:[%s501] sm:$0xff]
        %p582 = scmp.gt.s32.totalorder %s38, 0
        %s583 = scalar_select %p582, 1, 0
        %s584 = scvt.s32.f32 %s583
        %p585 = scmp.lt.s32.totalorder %s38, 1
        %s586 = scalar_select %p585, 1, 0
        %s587 = scvt.s32.f32 %s586
        %v588 = vld [vmem:[%s492 + $0x6] sm:$0x3]
        %v589 = vstv %s584
        %v590 = vmul.f32 %v588, %v589
        %v591 = vld [vmem:[%s510] sm:$0x3]
        %v592 = vstv %s587
        %v593 = vmul.f32 %v591, %v592
        %v595 = vrot.slane %v581, 6
        %v598 = vrot.slane %v593, 6
        %vm600 = vcmask 1041408
        %v601 = vsel %vm600, %v590, %v595
        %v602 = vsel %vm600, %v595, %v598
        %v603 = vld [vmem:[#allocation8] sm:$0xff]
        %v604 = vld [vmem:[#allocation8 + $0x8] sm:$0xff]
        %v605 = vld [vmem:[#allocation8 + $0x10] sm:$0xff]
        %v606 = vld [vmem:[#allocation8 + $0x18] sm:$0xff]
        %v607 = vld [vmem:[#allocation8 + $0x20] sm:$0xff]
        %v608 = vld [vmem:[#allocation8 + $0x28] sm:$0xff]
        %v609 = vld [vmem:[#allocation8 + $0x30] sm:$0xff]
        %v610 = vld [vmem:[#allocation8 + $0x38] sm:$0xff]
        %s611 = scalar_lea.vmem [#allocation8], 64
        %v612 = vld [vmem:[%s611] sm:$0xff]
        %v613 = vld [vmem:[%s611 + $0x8] sm:$0xff]
        %v614 = vld [vmem:[%s611 + $0x10] sm:$0xff]
        %v615 = vld [vmem:[%s611 + $0x18] sm:$0xff]
        %v616 = vld [vmem:[%s611 + $0x20] sm:$0xff]
        %v617 = vld [vmem:[%s611 + $0x28] sm:$0xff]
        %v618 = vld [vmem:[%s611 + $0x30] sm:$0xff]
        %v619 = vld [vmem:[%s611 + $0x38] sm:$0xff]
        %vm622 = vcmask 1046528
        %v623 = vrot.slane %v601, 1
        %v624 = vrot.slane %v602, 1
        %v625 = vsel %vm622, %v623, %v624
        %vm626 = vcmask 523264
        %v627 = vsel %vm626, %v625, 0
        %v629 = vsel %vm626, %v624, 0
        %631 = vmatprep.subr.mxu0 0.0
        %632 = vmatpush1.msra.mxu0 0.0
        %633 = vmatprep.subr.mxu0 0.0
        %634 = vmatpush1.msra.mxu0 0.0
        %635 = vmatprep.subr.mxu0 0.0
        %636 = vmatpush1.msra.mxu0 0.0
        %637 = vmatprep.subr.mxu0 0.0
        %638 = vmatpush1.msra.mxu0 0.0
        %639 = vmatprep.subr.mxu0 0.0
        %640 = vmatpush1.msra.mxu0 0.0
        %641 = vmatprep.subr.mxu0 0.0
        %642 = vmatpush1.msra.mxu0 0.0
        %643 = vmatprep.subr.mxu0 0.0
        %644 = vmatpush1.msra.mxu0 0.0
        %645 = vmatprep.subr.mxu0 0.0
        %646 = vmatpush1.msra.mxu0 0.0
        %647 = vmatprep.subr.mxu0 0.0
        %648 = vmatpush1.msra.mxu0 %v619
        %649 = vmatprep.subr.mxu0 0.0
        %650 = vmatpush1.msra.mxu0 %v618
        %651 = vmatprep.subr.mxu0 0.0
        %652 = vmatpush1.msra.mxu0 %v617
        %653 = vmatprep.subr.mxu0 0.0
        %654 = vmatpush1.msra.mxu0 %v616
        %655 = vmatprep.subr.mxu0 0.0
        %656 = vmatpush1.msra.mxu0 %v615
        %657 = vmatprep.subr.mxu0 0.0
        %658 = vmatpush1.msra.mxu0 %v614
        %659 = vmatprep.subr.mxu0 0.0
        %660 = vmatpush1.msra.mxu0 %v613
        %661 = vmatprep.subr.mxu0 0.0
        %662 = vmatpush1.msra.mxu0 %v612
        %663 = vmatprep.subr.mxu0 0.0
        %664 = vmatpush2.msra.mxu0 0.0
        %665 = vmatprep.subr.mxu0 0.0
        %666 = vmatpush2.msra.mxu0 0.0
        %667 = vmatprep.subr.mxu0 0.0
        %668 = vmatpush2.msra.mxu0 0.0
        %669 = vmatprep.subr.mxu0 0.0
        %670 = vmatpush2.msra.mxu0 0.0
        %671 = vmatprep.subr.mxu0 0.0
        %672 = vmatpush2.msra.mxu0 0.0
        %673 = vmatprep.subr.mxu0 0.0
        %674 = vmatpush2.msra.mxu0 0.0
        %675 = vmatprep.subr.mxu0 0.0
        %676 = vmatpush2.msra.mxu0 0.0
        %677 = vmatprep.subr.mxu0 0.0
        %678 = vmatpush2.msra.mxu0 0.0
        %679 = vmatprep.subr.mxu0 0.0
        %680 = vmatpush2.msra.mxu0 0.0
        %681 = vmatprep.subr.mxu0 0.0
        %682 = vmatpush2.msra.mxu0 0.0
        %683 = vmatprep.subr.mxu0 0.0
        %684 = vmatpush2.msra.mxu0 0.0
        %685 = vmatprep.subr.mxu0 0.0
        %686 = vmatpush2.msra.mxu0 0.0
        %687 = vmatprep.subr.mxu0 0.0
        %688 = vmatpush2.msra.mxu0 0.0
        %689 = vmatprep.subr.mxu0 0.0
        %690 = vmatpush2.msra.mxu0 0.0
        %691 = vmatprep.subr.mxu0 0.0
        %692 = vmatpush2.msra.mxu0 0.0
        %693 = vmatprep.subr.mxu0 0.0
        %694 = vmatpush2.msra.mxu0 0.0
        %695 = vmatprep.mubr.f32.mxu0 0.0
        %696 = vmatmul.mubr.f32.gmra.mxu0 %v627
        %v697 = vpop.f32.mrf.mxu0
        %v698 = vadd.f32 0.0, %v697
        %v699 = vpop.f32.mrf.mxu0
        %700 = vmatprep.mubr.f32.mxu0 0.0
        %701 = vmatmul.mubr.f32.gmra.mxu0 %v629
        %v702 = vpop.f32.mrf.mxu0
        %v703 = vadd.f32 0.0, %v702
        %v704 = vpop.f32.mrf.mxu0
        %705 = vdwg.mxu0
        %v706 = vsel %vm626, %v601, 0
        %v708 = vsel %vm626, %v602, 0
        %710 = vmatprep.subr.mxu0 0.0
        %711 = vmatpush1.msra.mxu0 0.0
        %712 = vmatprep.subr.mxu0 0.0
        %713 = vmatpush1.msra.mxu0 0.0
        %714 = vmatprep.subr.mxu0 0.0
        %715 = vmatpush1.msra.mxu0 0.0
        %716 = vmatprep.subr.mxu0 0.0
        %717 = vmatpush1.msra.mxu0 0.0
        %718 = vmatprep.subr.mxu0 0.0
        %719 = vmatpush1.msra.mxu0 0.0
        %720 = vmatprep.subr.mxu0 0.0
        %721 = vmatpush1.msra.mxu0 0.0
        %722 = vmatprep.subr.mxu0 0.0
        %723 = vmatpush1.msra.mxu0 0.0
        %724 = vmatprep.subr.mxu0 0.0
        %725 = vmatpush1.msra.mxu0 0.0
        %726 = vmatprep.subr.mxu0 0.0
        %727 = vmatpush1.msra.mxu0 %v610
        %728 = vmatprep.subr.mxu0 0.0
        %729 = vmatpush1.msra.mxu0 %v609
        %730 = vmatprep.subr.mxu0 0.0
        %731 = vmatpush1.msra.mxu0 %v608
        %732 = vmatprep.subr.mxu0 0.0
        %733 = vmatpush1.msra.mxu0 %v607
        %734 = vmatprep.subr.mxu0 0.0
        %735 = vmatpush1.msra.mxu0 %v606
        %736 = vmatprep.subr.mxu0 0.0
        %737 = vmatpush1.msra.mxu0 %v605
        %738 = vmatprep.subr.mxu0 0.0
        %739 = vmatpush1.msra.mxu0 %v604
        %740 = vmatprep.subr.mxu0 0.0
        %741 = vmatpush1.msra.mxu0 %v603
        %742 = vmatprep.subr.mxu0 0.0
        %743 = vmatpush2.msra.mxu0 0.0
        %744 = vmatprep.subr.mxu0 0.0
        %745 = vmatpush2.msra.mxu0 0.0
        %746 = vmatprep.subr.mxu0 0.0
        %747 = vmatpush2.msra.mxu0 0.0
        %748 = vmatprep.subr.mxu0 0.0
        %749 = vmatpush2.msra.mxu0 0.0
        %750 = vmatprep.subr.mxu0 0.0
        %751 = vmatpush2.msra.mxu0 0.0
        %752 = vmatprep.subr.mxu0 0.0
        %753 = vmatpush2.msra.mxu0 0.0
        %754 = vmatprep.subr.mxu0 0.0
        %755 = vmatpush2.msra.mxu0 0.0
        %756 = vmatprep.subr.mxu0 0.0
        %757 = vmatpush2.msra.mxu0 0.0
        %758 = vmatprep.subr.mxu0 0.0
        %759 = vmatpush2.msra.mxu0 0.0
        %760 = vmatprep.subr.mxu0 0.0
        %761 = vmatpush2.msra.mxu0 0.0
        %762 = vmatprep.subr.mxu0 0.0
        %763 = vmatpush2.msra.mxu0 0.0
        %764 = vmatprep.subr.mxu0 0.0
        %765 = vmatpush2.msra.mxu0 0.0
        %766 = vmatprep.subr.mxu0 0.0
        %767 = vmatpush2.msra.mxu0 0.0
        %768 = vmatprep.subr.mxu0 0.0
        %769 = vmatpush2.msra.mxu0 0.0
        %770 = vmatprep.subr.mxu0 0.0
        %771 = vmatpush2.msra.mxu0 0.0
        %772 = vmatprep.subr.mxu0 0.0
        %773 = vmatpush2.msra.mxu0 0.0
        %774 = vmatprep.mubr.f32.mxu0 0.0
        %775 = vmatmul.mubr.f32.gmra.mxu0 %v706
        %v776 = vpop.f32.mrf.mxu0
        %v777 = vadd.f32 %v698, %v776
        %v778 = vpop.f32.mrf.mxu0
        %779 = vmatprep.mubr.f32.mxu0 0.0
        %780 = vmatmul.mubr.f32.gmra.mxu0 %v708
        %v781 = vpop.f32.mrf.mxu0
        %v782 = vadd.f32 %v703, %v781
        %v783 = vpop.f32.mrf.mxu0
        %784 = vdwg.mxu0
        %s785 = scalar_lea.vmem [#allocation8], 128
        %v786 = vld [vmem:[%s785] sm:$0xff]
        %v787 = vld [vmem:[%s785 + $0x8] sm:$0xff]
        %v788 = vld [vmem:[%s785 + $0x10] sm:$0xff]
        %v789 = vld [vmem:[%s785 + $0x18] sm:$0xff]
        %v790 = vld [vmem:[%s785 + $0x20] sm:$0xff]
        %v791 = vld [vmem:[%s785 + $0x28] sm:$0xff]
        %v792 = vld [vmem:[%s785 + $0x30] sm:$0xff]
        %v793 = vld [vmem:[%s785 + $0x38] sm:$0xff]
        %vm794 = vcmask 1045504
        %v795 = vrot.slane %v601, 2
        %v796 = vrot.slane %v602, 2
        %v797 = vsel %vm794, %v795, %v796
        %v798 = vsel %vm626, %v797, 0
        %v800 = vsel %vm626, %v796, 0
        %802 = vmatprep.subr.mxu0 0.0
        %803 = vmatpush1.msra.mxu0 0.0
        %804 = vmatprep.subr.mxu0 0.0
        %805 = vmatpush1.msra.mxu0 0.0
        %806 = vmatprep.subr.mxu0 0.0
        %807 = vmatpush1.msra.mxu0 0.0
        %808 = vmatprep.subr.mxu0 0.0
        %809 = vmatpush1.msra.mxu0 0.0
        %810 = vmatprep.subr.mxu0 0.0
        %811 = vmatpush1.msra.mxu0 0.0
        %812 = vmatprep.subr.mxu0 0.0
        %813 = vmatpush1.msra.mxu0 0.0
        %814 = vmatprep.subr.mxu0 0.0
        %815 = vmatpush1.msra.mxu0 0.0
        %816 = vmatprep.subr.mxu0 0.0
        %817 = vmatpush1.msra.mxu0 0.0
        %818 = vmatprep.subr.mxu0 0.0
        %819 = vmatpush1.msra.mxu0 %v793
        %820 = vmatprep.subr.mxu0 0.0
        %821 = vmatpush1.msra.mxu0 %v792
        %822 = vmatprep.subr.mxu0 0.0
        %823 = vmatpush1.msra.mxu0 %v791
        %824 = vmatprep.subr.mxu0 0.0
        %825 = vmatpush1.msra.mxu0 %v790
        %826 = vmatprep.subr.mxu0 0.0
        %827 = vmatpush1.msra.mxu0 %v789
        %828 = vmatprep.subr.mxu0 0.0
        %829 = vmatpush1.msra.mxu0 %v788
        %830 = vmatprep.subr.mxu0 0.0
        %831 = vmatpush1.msra.mxu0 %v787
        %832 = vmatprep.subr.mxu0 0.0
        %833 = vmatpush1.msra.mxu0 %v786
        %834 = vmatprep.subr.mxu0 0.0
        %835 = vmatpush2.msra.mxu0 0.0
        %836 = vmatprep.subr.mxu0 0.0
        %837 = vmatpush2.msra.mxu0 0.0
        %838 = vmatprep.subr.mxu0 0.0
        %839 = vmatpush2.msra.mxu0 0.0
        %840 = vmatprep.subr.mxu0 0.0
        %841 = vmatpush2.msra.mxu0 0.0
        %842 = vmatprep.subr.mxu0 0.0
        %843 = vmatpush2.msra.mxu0 0.0
        %844 = vmatprep.subr.mxu0 0.0
        %845 = vmatpush2.msra.mxu0 0.0
        %846 = vmatprep.subr.mxu0 0.0
        %847 = vmatpush2.msra.mxu0 0.0
        %848 = vmatprep.subr.mxu0 0.0
        %849 = vmatpush2.msra.mxu0 0.0
        %850 = vmatprep.subr.mxu0 0.0
        %851 = vmatpush2.msra.mxu0 0.0
        %852 = vmatprep.subr.mxu0 0.0
        %853 = vmatpush2.msra.mxu0 0.0
        %854 = vmatprep.subr.mxu0 0.0
        %855 = vmatpush2.msra.mxu0 0.0
        %856 = vmatprep.subr.mxu0 0.0
        %857 = vmatpush2.msra.mxu0 0.0
        %858 = vmatprep.subr.mxu0 0.0
        %859 = vmatpush2.msra.mxu0 0.0
        %860 = vmatprep.subr.mxu0 0.0
        %861 = vmatpush2.msra.mxu0 0.0
        %862 = vmatprep.subr.mxu0 0.0
        %863 = vmatpush2.msra.mxu0 0.0
        %864 = vmatprep.subr.mxu0 0.0
        %865 = vmatpush2.msra.mxu0 0.0
        %866 = vmatprep.mubr.f32.mxu0 0.0
        %867 = vmatmul.mubr.f32.gmra.mxu0 %v798
        %v868 = vpop.f32.mrf.mxu0
        %v869 = vadd.f32 0.0, %v868
        %v870 = vpop.f32.mrf.mxu0
        %871 = vmatprep.mubr.f32.mxu0 0.0
        %872 = vmatmul.mubr.f32.gmra.mxu0 %v800
        %v873 = vpop.f32.mrf.mxu0
        %v874 = vadd.f32 0.0, %v873
        %v875 = vpop.f32.mrf.mxu0
        %876 = vdwg.mxu0
        %v877 = vadd.f32 %v777, %v869
        %v878 = vadd.f32 %v782, %v874
        %v879 = vld [vmem:[%s4] sm:$0x1]
        %v881 = vlaneseq
        %v882 = vshrl.u32 %v881, 7
        %v883 = vsub.s32 0, %v882
        %v884 = vrot.slane %v879, %v883
        %v886 = vadd.f32 %v877, %v884
        %v887 = vadd.f32 %v878, %v884
        %v888 = vmax.f32 %v886, 0.0
        %v889 = vmax.f32 %v887, 0.0
        %v890 = vld [vmem:[#allocation10] sm:$0xff]
        %v891 = vld [vmem:[#allocation10 + $0x8] sm:$0xff]
        %v892 = vld [vmem:[#allocation10 + $0x10] sm:$0xff]
        %v893 = vld [vmem:[#allocation10 + $0x18] sm:$0xff]
        %v894 = vld [vmem:[#allocation10 + $0x20] sm:$0xff]
        %v895 = vld [vmem:[#allocation10 + $0x28] sm:$0xff]
        %v896 = vld [vmem:[#allocation10 + $0x30] sm:$0xff]
        %v897 = vld [vmem:[#allocation10 + $0x38] sm:$0xff]
        %v898 = vld [vmem:[%s6] sm:$0x1]
        %v900 = vlaneseq
        %v901 = vshrl.u32 %v900, 7
        %v902 = vsub.s32 0, %v901
        %v903 = vrot.slane %v898, %v902
        %v906 = vsel %vm626, %v888, 0
        %v909 = vsel %vm626, %v889, 0
        %911 = vmatprep.subr.mxu0 0.0
        %912 = vmatpush1.msra.mxu0 0.0
        %913 = vmatprep.subr.mxu0 0.0
        %914 = vmatpush1.msra.mxu0 0.0
        %915 = vmatprep.subr.mxu0 0.0
        %916 = vmatpush1.msra.mxu0 0.0
        %917 = vmatprep.subr.mxu0 0.0
        %918 = vmatpush1.msra.mxu0 0.0
        %919 = vmatprep.subr.mxu0 0.0
        %920 = vmatpush1.msra.mxu0 0.0
        %921 = vmatprep.subr.mxu0 0.0
        %922 = vmatpush1.msra.mxu0 0.0
        %923 = vmatprep.subr.mxu0 0.0
        %924 = vmatpush1.msra.mxu0 0.0
        %925 = vmatprep.subr.mxu0 0.0
        %926 = vmatpush1.msra.mxu0 0.0
        %927 = vmatprep.subr.mxu0 0.0
        %928 = vmatpush1.msra.mxu0 %v897
        %929 = vmatprep.subr.mxu0 0.0
        %930 = vmatpush1.msra.mxu0 %v896
        %931 = vmatprep.subr.mxu0 0.0
        %932 = vmatpush1.msra.mxu0 %v895
        %933 = vmatprep.subr.mxu0 0.0
        %934 = vmatpush1.msra.mxu0 %v894
        %935 = vmatprep.subr.mxu0 0.0
        %936 = vmatpush1.msra.mxu0 %v893
        %937 = vmatprep.subr.mxu0 0.0
        %938 = vmatpush1.msra.mxu0 %v892
        %939 = vmatprep.subr.mxu0 0.0
        %940 = vmatpush1.msra.mxu0 %v891
        %941 = vmatprep.subr.mxu0 0.0
        %942 = vmatpush1.msra.mxu0 %v890
        %943 = vmatprep.subr.mxu0 0.0
        %944 = vmatpush2.msra.mxu0 0.0
        %945 = vmatprep.subr.mxu0 0.0
        %946 = vmatpush2.msra.mxu0 0.0
        %947 = vmatprep.subr.mxu0 0.0
        %948 = vmatpush2.msra.mxu0 0.0
        %949 = vmatprep.subr.mxu0 0.0
        %950 = vmatpush2.msra.mxu0 0.0
        %951 = vmatprep.subr.mxu0 0.0
        %952 = vmatpush2.msra.mxu0 0.0
        %953 = vmatprep.subr.mxu0 0.0
        %954 = vmatpush2.msra.mxu0 0.0
        %955 = vmatprep.subr.mxu0 0.0
        %956 = vmatpush2.msra.mxu0 0.0
        %957 = vmatprep.subr.mxu0 0.0
        %958 = vmatpush2.msra.mxu0 0.0
        %959 = vmatprep.subr.mxu0 0.0
        %960 = vmatpush2.msra.mxu0 0.0
        %961 = vmatprep.subr.mxu0 0.0
        %962 = vmatpush2.msra.mxu0 0.0
        %963 = vmatprep.subr.mxu0 0.0
        %964 = vmatpush2.msra.mxu0 0.0
        %965 = vmatprep.subr.mxu0 0.0
        %966 = vmatpush2.msra.mxu0 0.0
        %967 = vmatprep.subr.mxu0 0.0
        %968 = vmatpush2.msra.mxu0 0.0
        %969 = vmatprep.subr.mxu0 0.0
        %970 = vmatpush2.msra.mxu0 0.0
        %971 = vmatprep.subr.mxu0 0.0
        %972 = vmatpush2.msra.mxu0 0.0
        %973 = vmatprep.subr.mxu0 0.0
        %974 = vmatpush2.msra.mxu0 0.0
        %975 = vmatprep.mubr.f32.mxu0 0.0
        %976 = vmatmul.mubr.f32.gmra.mxu0 %v906
        %v977 = vpop.f32.mrf.mxu0
        %v978 = vadd.f32 %v903, %v977
        %v979 = vpop.f32.mrf.mxu0
        %980 = vmatprep.mubr.f32.mxu0 0.0
        %981 = vmatmul.mubr.f32.gmra.mxu0 %v909
        %v982 = vpop.f32.mrf.mxu0
        %v983 = vadd.f32 %v903, %v982
        %v984 = vpop.f32.mrf.mxu0
        %985 = vdwg.mxu0
        %v986 = vmax.f32 %v978, 0.0
        %v987 = vmax.f32 %v983, 0.0
        %v988 = vlaneseq
        %v989 = vshrl.u32 %v988, 7
        %v990 = vadd.s32 %v989, 8
        %s991 = smul.u32 %s38, 8
        %s992 = ssub.s32 %s991, 1
        %v993 = vstv %s992
        %v994 = vadd.s32 %v989, %v993
        %v995 = vadd.s32 %v990, %v993
        %vm996 = vcmp.ge.s32.totalorder %v994, 0
        %vm997 = vcmp.ge.s32.totalorder %v995, 0
        %vm998 = vcmp.lt.s32.totalorder %v994, 16
        %vm999 = vcmp.lt.s32.totalorder %v995, 16
        %vm1000 = vmand %vm996, %vm998
        %vm1001 = vmand %vm997, %vm999
        %v1002 = vsel %vm1000, 1, 0
        %v1003 = vsel %vm1001, 1, 0
        %vm1004 = vcmp.eq.s32.totalorder %v1002, 1
        %vm1005 = vcmp.eq.s32.totalorder %v1003, 1
        %v1006 = vsel %vm1004, %v986, 0.0
        %v1007 = vsel %vm1005, %v987, 0.0
        %v1008 = vld [vmem:[#allocation11] sm:$0xff]
        %v1009 = vld [vmem:[#allocation11 + $0x8] sm:$0xff]
        %v1010 = vld [vmem:[#allocation11 + $0x10] sm:$0xff]
        %v1011 = vld [vmem:[#allocation11 + $0x18] sm:$0xff]
        %v1012 = vld [vmem:[#allocation11 + $0x20] sm:$0xff]
        %v1013 = vld [vmem:[#allocation11 + $0x28] sm:$0xff]
        %v1014 = vld [vmem:[#allocation11 + $0x30] sm:$0xff]
        %v1015 = vld [vmem:[#allocation11 + $0x38] sm:$0xff]
        %s1016 = scalar_lea.vmem [#allocation11], 64
        %v1017 = vld [vmem:[%s1016] sm:$0xff]
        %v1018 = vld [vmem:[%s1016 + $0x8] sm:$0xff]
        %v1019 = vld [vmem:[%s1016 + $0x10] sm:$0xff]
        %v1020 = vld [vmem:[%s1016 + $0x18] sm:$0xff]
        %v1021 = vld [vmem:[%s1016 + $0x20] sm:$0xff]
        %v1022 = vld [vmem:[%s1016 + $0x28] sm:$0xff]
        %v1023 = vld [vmem:[%s1016 + $0x30] sm:$0xff]
        %v1024 = vld [vmem:[%s1016 + $0x38] sm:$0xff]
        %v1027 = vrot.slane %v1006, 1
        %v1028 = vrot.slane %v1007, 1
        %v1029 = vsel %vm622, %v1027, %v1028
        %v1030 = vsel %vm626, %v1029, 0
        %1032 = vmatprep.subr.mxu0 0.0
        %1033 = vmatpush1.msra.mxu0 0.0
        %1034 = vmatprep.subr.mxu0 0.0
        %1035 = vmatpush1.msra.mxu0 0.0
        %1036 = vmatprep.subr.mxu0 0.0
        %1037 = vmatpush1.msra.mxu0 0.0
        %1038 = vmatprep.subr.mxu0 0.0
        %1039 = vmatpush1.msra.mxu0 0.0
        %1040 = vmatprep.subr.mxu0 0.0
        %1041 = vmatpush1.msra.mxu0 0.0
        %1042 = vmatprep.subr.mxu0 0.0
        %1043 = vmatpush1.msra.mxu0 0.0
        %1044 = vmatprep.subr.mxu0 0.0
        %1045 = vmatpush1.msra.mxu0 0.0
        %1046 = vmatprep.subr.mxu0 0.0
        %1047 = vmatpush1.msra.mxu0 0.0
        %1048 = vmatprep.subr.mxu0 0.0
        %1049 = vmatpush1.msra.mxu0 %v1024
        %1050 = vmatprep.subr.mxu0 0.0
        %1051 = vmatpush1.msra.mxu0 %v1023
        %1052 = vmatprep.subr.mxu0 0.0
        %1053 = vmatpush1.msra.mxu0 %v1022
        %1054 = vmatprep.subr.mxu0 0.0
        %1055 = vmatpush1.msra.mxu0 %v1021
        %1056 = vmatprep.subr.mxu0 0.0
        %1057 = vmatpush1.msra.mxu0 %v1020
        %1058 = vmatprep.subr.mxu0 0.0
        %1059 = vmatpush1.msra.mxu0 %v1019
        %1060 = vmatprep.subr.mxu0 0.0
        %1061 = vmatpush1.msra.mxu0 %v1018
        %1062 = vmatprep.subr.mxu0 0.0
        %1063 = vmatpush1.msra.mxu0 %v1017
        %1064 = vmatprep.subr.mxu0 0.0
        %1065 = vmatpush2.msra.mxu0 0.0
        %1066 = vmatprep.subr.mxu0 0.0
        %1067 = vmatpush2.msra.mxu0 0.0
        %1068 = vmatprep.subr.mxu0 0.0
        %1069 = vmatpush2.msra.mxu0 0.0
        %1070 = vmatprep.subr.mxu0 0.0
        %1071 = vmatpush2.msra.mxu0 0.0
        %1072 = vmatprep.subr.mxu0 0.0
        %1073 = vmatpush2.msra.mxu0 0.0
        %1074 = vmatprep.subr.mxu0 0.0
        %1075 = vmatpush2.msra.mxu0 0.0
        %1076 = vmatprep.subr.mxu0 0.0
        %1077 = vmatpush2.msra.mxu0 0.0
        %1078 = vmatprep.subr.mxu0 0.0
        %1079 = vmatpush2.msra.mxu0 0.0
        %1080 = vmatprep.subr.mxu0 0.0
        %1081 = vmatpush2.msra.mxu0 0.0
        %1082 = vmatprep.subr.mxu0 0.0
        %1083 = vmatpush2.msra.mxu0 0.0
        %1084 = vmatprep.subr.mxu0 0.0
        %1085 = vmatpush2.msra.mxu0 0.0
        %1086 = vmatprep.subr.mxu0 0.0
        %1087 = vmatpush2.msra.mxu0 0.0
        %1088 = vmatprep.subr.mxu0 0.0
        %1089 = vmatpush2.msra.mxu0 0.0
        %1090 = vmatprep.subr.mxu0 0.0
        %1091 = vmatpush2.msra.mxu0 0.0
        %1092 = vmatprep.subr.mxu0 0.0
        %1093 = vmatpush2.msra.mxu0 0.0
        %1094 = vmatprep.subr.mxu0 0.0
        %1095 = vmatpush2.msra.mxu0 0.0
        %1096 = vmatprep.mubr.f32.mxu0 0.0
        %1097 = vmatmul.mubr.f32.gmra.mxu0 %v1030
        %v1098 = vpop.f32.mrf.mxu0
        %v1099 = vadd.f32 0.0, %v1098
        %v1100 = vpop.f32.mrf.mxu0
        %1101 = vdwg.mxu0
        %v1102 = vsel %vm626, %v1006, 0
        %1104 = vmatprep.subr.mxu0 0.0
        %1105 = vmatpush1.msra.mxu0 0.0
        %1106 = vmatprep.subr.mxu0 0.0
        %1107 = vmatpush1.msra.mxu0 0.0
        %1108 = vmatprep.subr.mxu0 0.0
        %1109 = vmatpush1.msra.mxu0 0.0
        %1110 = vmatprep.subr.mxu0 0.0
        %1111 = vmatpush1.msra.mxu0 0.0
        %1112 = vmatprep.subr.mxu0 0.0
        %1113 = vmatpush1.msra.mxu0 0.0
        %1114 = vmatprep.subr.mxu0 0.0
        %1115 = vmatpush1.msra.mxu0 0.0
        %1116 = vmatprep.subr.mxu0 0.0
        %1117 = vmatpush1.msra.mxu0 0.0
        %1118 = vmatprep.subr.mxu0 0.0
        %1119 = vmatpush1.msra.mxu0 0.0
        %1120 = vmatprep.subr.mxu0 0.0
        %1121 = vmatpush1.msra.mxu0 %v1015
        %1122 = vmatprep.subr.mxu0 0.0
        %1123 = vmatpush1.msra.mxu0 %v1014
        %1124 = vmatprep.subr.mxu0 0.0
        %1125 = vmatpush1.msra.mxu0 %v1013
        %1126 = vmatprep.subr.mxu0 0.0
        %1127 = vmatpush1.msra.mxu0 %v1012
        %1128 = vmatprep.subr.mxu0 0.0
        %1129 = vmatpush1.msra.mxu0 %v1011
        %1130 = vmatprep.subr.mxu0 0.0
        %1131 = vmatpush1.msra.mxu0 %v1010
        %1132 = vmatprep.subr.mxu0 0.0
        %1133 = vmatpush1.msra.mxu0 %v1009
        %1134 = vmatprep.subr.mxu0 0.0
        %1135 = vmatpush1.msra.mxu0 %v1008
        %1136 = vmatprep.subr.mxu0 0.0
        %1137 = vmatpush2.msra.mxu0 0.0
        %1138 = vmatprep.subr.mxu0 0.0
        %1139 = vmatpush2.msra.mxu0 0.0
        %1140 = vmatprep.subr.mxu0 0.0
        %1141 = vmatpush2.msra.mxu0 0.0
        %1142 = vmatprep.subr.mxu0 0.0
        %1143 = vmatpush2.msra.mxu0 0.0
        %1144 = vmatprep.subr.mxu0 0.0
        %1145 = vmatpush2.msra.mxu0 0.0
        %1146 = vmatprep.subr.mxu0 0.0
        %1147 = vmatpush2.msra.mxu0 0.0
        %1148 = vmatprep.subr.mxu0 0.0
        %1149 = vmatpush2.msra.mxu0 0.0
        %1150 = vmatprep.subr.mxu0 0.0
        %1151 = vmatpush2.msra.mxu0 0.0
        %1152 = vmatprep.subr.mxu0 0.0
        %1153 = vmatpush2.msra.mxu0 0.0
        %1154 = vmatprep.subr.mxu0 0.0
        %1155 = vmatpush2.msra.mxu0 0.0
        %1156 = vmatprep.subr.mxu0 0.0
        %1157 = vmatpush2.msra.mxu0 0.0
        %1158 = vmatprep.subr.mxu0 0.0
        %1159 = vmatpush2.msra.mxu0 0.0
        %1160 = vmatprep.subr.mxu0 0.0
        %1161 = vmatpush2.msra.mxu0 0.0
        %1162 = vmatprep.subr.mxu0 0.0
        %1163 = vmatpush2.msra.mxu0 0.0
        %1164 = vmatprep.subr.mxu0 0.0
        %1165 = vmatpush2.msra.mxu0 0.0
        %1166 = vmatprep.subr.mxu0 0.0
        %1167 = vmatpush2.msra.mxu0 0.0
        %1168 = vmatprep.mubr.f32.mxu0 0.0
        %1169 = vmatmul.mubr.f32.gmra.mxu0 %v1102
        %v1170 = vpop.f32.mrf.mxu0
        %v1171 = vadd.f32 %v1099, %v1170
        %v1172 = vpop.f32.mrf.mxu0
        %1173 = vdwg.mxu0
        %s1174 = scalar_lea.vmem [#allocation11], 128
        %v1175 = vld [vmem:[%s1174] sm:$0xff]
        %v1176 = vld [vmem:[%s1174 + $0x8] sm:$0xff]
        %v1177 = vld [vmem:[%s1174 + $0x10] sm:$0xff]
        %v1178 = vld [vmem:[%s1174 + $0x18] sm:$0xff]
        %v1179 = vld [vmem:[%s1174 + $0x20] sm:$0xff]
        %v1180 = vld [vmem:[%s1174 + $0x28] sm:$0xff]
        %v1181 = vld [vmem:[%s1174 + $0x30] sm:$0xff]
        %v1182 = vld [vmem:[%s1174 + $0x38] sm:$0xff]
        %v1183 = vrot.slane %v1006, 2
        %v1184 = vrot.slane %v1007, 2
        %v1185 = vsel %vm794, %v1183, %v1184
        %v1186 = vsel %vm626, %v1185, 0
        %1188 = vmatprep.subr.mxu0 0.0
        %1189 = vmatpush1.msra.mxu0 0.0
        %1190 = vmatprep.subr.mxu0 0.0
        %1191 = vmatpush1.msra.mxu0 0.0
        %1192 = vmatprep.subr.mxu0 0.0
        %1193 = vmatpush1.msra.mxu0 0.0
        %1194 = vmatprep.subr.mxu0 0.0
        %1195 = vmatpush1.msra.mxu0 0.0
        %1196 = vmatprep.subr.mxu0 0.0
        %1197 = vmatpush1.msra.mxu0 0.0
        %1198 = vmatprep.subr.mxu0 0.0
        %1199 = vmatpush1.msra.mxu0 0.0
        %1200 = vmatprep.subr.mxu0 0.0
        %1201 = vmatpush1.msra.mxu0 0.0
        %1202 = vmatprep.subr.mxu0 0.0
        %1203 = vmatpush1.msra.mxu0 0.0
        %1204 = vmatprep.subr.mxu0 0.0
        %1205 = vmatpush1.msra.mxu0 %v1182
        %1206 = vmatprep.subr.mxu0 0.0
        %1207 = vmatpush1.msra.mxu0 %v1181
        %1208 = vmatprep.subr.mxu0 0.0
        %1209 = vmatpush1.msra.mxu0 %v1180
        %1210 = vmatprep.subr.mxu0 0.0
        %1211 = vmatpush1.msra.mxu0 %v1179
        %1212 = vmatprep.subr.mxu0 0.0
        %1213 = vmatpush1.msra.mxu0 %v1178
        %1214 = vmatprep.subr.mxu0 0.0
        %1215 = vmatpush1.msra.mxu0 %v1177
        %1216 = vmatprep.subr.mxu0 0.0
        %1217 = vmatpush1.msra.mxu0 %v1176
        %1218 = vmatprep.subr.mxu0 0.0
        %1219 = vmatpush1.msra.mxu0 %v1175
        %1220 = vmatprep.subr.mxu0 0.0
        %1221 = vmatpush2.msra.mxu0 0.0
        %1222 = vmatprep.subr.mxu0 0.0
        %1223 = vmatpush2.msra.mxu0 0.0
        %1224 = vmatprep.subr.mxu0 0.0
        %1225 = vmatpush2.msra.mxu0 0.0
        %1226 = vmatprep.subr.mxu0 0.0
        %1227 = vmatpush2.msra.mxu0 0.0
        %1228 = vmatprep.subr.mxu0 0.0
        %1229 = vmatpush2.msra.mxu0 0.0
        %1230 = vmatprep.subr.mxu0 0.0
        %1231 = vmatpush2.msra.mxu0 0.0
        %1232 = vmatprep.subr.mxu0 0.0
        %1233 = vmatpush2.msra.mxu0 0.0
        %1234 = vmatprep.subr.mxu0 0.0
        %1235 = vmatpush2.msra.mxu0 0.0
        %1236 = vmatprep.subr.mxu0 0.0
        %1237 = vmatpush2.msra.mxu0 0.0
        %1238 = vmatprep.subr.mxu0 0.0
        %1239 = vmatpush2.msra.mxu0 0.0
        %1240 = vmatprep.subr.mxu0 0.0
        %1241 = vmatpush2.msra.mxu0 0.0
        %1242 = vmatprep.subr.mxu0 0.0
        %1243 = vmatpush2.msra.mxu0 0.0
        %1244 = vmatprep.subr.mxu0 0.0
        %1245 = vmatpush2.msra.mxu0 0.0
        %1246 = vmatprep.subr.mxu0 0.0
        %1247 = vmatpush2.msra.mxu0 0.0
        %1248 = vmatprep.subr.mxu0 0.0
        %1249 = vmatpush2.msra.mxu0 0.0
        %1250 = vmatprep.subr.mxu0 0.0
        %1251 = vmatpush2.msra.mxu0 0.0
        %1252 = vmatprep.mubr.f32.mxu0 0.0
        %1253 = vmatmul.mubr.f32.gmra.mxu0 %v1186
        %v1254 = vpop.f32.mrf.mxu0
        %v1255 = vadd.f32 0.0, %v1254
        %v1256 = vpop.f32.mrf.mxu0
        %1257 = vdwg.mxu0
        %v1258 = vadd.f32 %v1171, %v1255
        %v1259 = vld [vmem:[%s8] sm:$0x1]
        %v1261 = vlaneseq
        %v1262 = vshrl.u32 %v1261, 7
        %v1263 = vsub.s32 0, %v1262
        %v1264 = vrot.slane %v1259, %v1263
        %v1266 = vadd.f32 %v1258, %v1264
        %v1267 = vmax.f32 %v1266, 0.0
        %v1268 = vld [vmem:[#allocation13] sm:$0xff]
        %v1269 = vld [vmem:[#allocation13 + $0x8] sm:$0xff]
        %v1270 = vld [vmem:[#allocation13 + $0x10] sm:$0xff]
        %v1271 = vld [vmem:[#allocation13 + $0x18] sm:$0xff]
        %v1272 = vld [vmem:[#allocation13 + $0x20] sm:$0xff]
        %v1273 = vld [vmem:[#allocation13 + $0x28] sm:$0xff]
        %v1274 = vld [vmem:[#allocation13 + $0x30] sm:$0xff]
        %v1275 = vld [vmem:[#allocation13 + $0x38] sm:$0xff]
        %v1276 = vld [vmem:[%s10] sm:$0x1]
        %v1278 = vlaneseq
        %v1279 = vshrl.u32 %v1278, 7
        %v1280 = vsub.s32 0, %v1279
        %v1281 = vrot.slane %v1276, %v1280
        %v1284 = vsel %vm626, %v1267, 0
        %1286 = vmatprep.subr.mxu0 0.0
        %1287 = vmatpush1.msra.mxu0 0.0
        %1288 = vmatprep.subr.mxu0 0.0
        %1289 = vmatpush1.msra.mxu0 0.0
        %1290 = vmatprep.subr.mxu0 0.0
        %1291 = vmatpush1.msra.mxu0 0.0
        %1292 = vmatprep.subr.mxu0 0.0
        %1293 = vmatpush1.msra.mxu0 0.0
        %1294 = vmatprep.subr.mxu0 0.0
        %1295 = vmatpush1.msra.mxu0 0.0
        %1296 = vmatprep.subr.mxu0 0.0
        %1297 = vmatpush1.msra.mxu0 0.0
        %1298 = vmatprep.subr.mxu0 0.0
        %1299 = vmatpush1.msra.mxu0 0.0
        %1300 = vmatprep.subr.mxu0 0.0
        %1301 = vmatpush1.msra.mxu0 0.0
        %1302 = vmatprep.subr.mxu0 0.0
        %1303 = vmatpush1.msra.mxu0 %v1275
        %1304 = vmatprep.subr.mxu0 0.0
        %1305 = vmatpush1.msra.mxu0 %v1274
        %1306 = vmatprep.subr.mxu0 0.0
        %1307 = vmatpush1.msra.mxu0 %v1273
        %1308 = vmatprep.subr.mxu0 0.0
        %1309 = vmatpush1.msra.mxu0 %v1272
        %1310 = vmatprep.subr.mxu0 0.0
        %1311 = vmatpush1.msra.mxu0 %v1271
        %1312 = vmatprep.subr.mxu0 0.0
        %1313 = vmatpush1.msra.mxu0 %v1270
        %1314 = vmatprep.subr.mxu0 0.0
        %1315 = vmatpush1.msra.mxu0 %v1269
        %1316 = vmatprep.subr.mxu0 0.0
        %1317 = vmatpush1.msra.mxu0 %v1268
        %1318 = vmatprep.subr.mxu0 0.0
        %1319 = vmatpush2.msra.mxu0 0.0
        %1320 = vmatprep.subr.mxu0 0.0
        %1321 = vmatpush2.msra.mxu0 0.0
        %1322 = vmatprep.subr.mxu0 0.0
        %1323 = vmatpush2.msra.mxu0 0.0
        %1324 = vmatprep.subr.mxu0 0.0
        %1325 = vmatpush2.msra.mxu0 0.0
        %1326 = vmatprep.subr.mxu0 0.0
        %1327 = vmatpush2.msra.mxu0 0.0
        %1328 = vmatprep.subr.mxu0 0.0
        %1329 = vmatpush2.msra.mxu0 0.0
        %1330 = vmatprep.subr.mxu0 0.0
        %1331 = vmatpush2.msra.mxu0 0.0
        %1332 = vmatprep.subr.mxu0 0.0
        %1333 = vmatpush2.msra.mxu0 0.0
        %1334 = vmatprep.subr.mxu0 0.0
        %1335 = vmatpush2.msra.mxu0 0.0
        %1336 = vmatprep.subr.mxu0 0.0
        %1337 = vmatpush2.msra.mxu0 0.0
        %1338 = vmatprep.subr.mxu0 0.0
        %1339 = vmatpush2.msra.mxu0 0.0
        %1340 = vmatprep.subr.mxu0 0.0
        %1341 = vmatpush2.msra.mxu0 0.0
        %1342 = vmatprep.subr.mxu0 0.0
        %1343 = vmatpush2.msra.mxu0 0.0
        %1344 = vmatprep.subr.mxu0 0.0
        %1345 = vmatpush2.msra.mxu0 0.0
        %1346 = vmatprep.subr.mxu0 0.0
        %1347 = vmatpush2.msra.mxu0 0.0
        %1348 = vmatprep.subr.mxu0 0.0
        %1349 = vmatpush2.msra.mxu0 0.0
        %1350 = vmatprep.mubr.f32.mxu0 0.0
        %1351 = vmatmul.mubr.f32.gmra.mxu0 %v1284
        %v1352 = vpop.f32.mrf.mxu0
        %v1353 = vadd.f32 %v1281, %v1352
        %v1354 = vpop.f32.mrf.mxu0
        %1355 = vdwg.mxu0
        %v1356 = vadd.f32 %v1353, %v581
        %v1357 = vmax.f32 %v1356, 0.0
        %1358 = vst.msk [vmem:[%s574] sm:$0xff] %vm626, %v1357
        %s1359 = sand.u32 %s319, 1
        %s1360 = scalar_lea.sflag [#allocation4], %s1359
        %s1361 = sand.u32 %s319, 1
        %s1362 = smul.addr %s1361, 8
        %s1363 = scalar_lea.vmem [#allocation14], %s1362
        // Predicated region
        $region93: #{tpu_custom_call.1} parent=63 // pred_check
          %p1364 = pneg %p329
        $region94: #{tpu_custom_call.1} parent=63 // pred_check_branch
          %1366 = sbr.rel (%p1364) target = $region96
        $region95: #{tpu_custom_call.1} parent=63 // pred_region
          %s1368 = ssub.s32 128, 128
          %1369 = vsyncadd %s1360, %s1368
          %s1370 = smul.addr %s37, 2
          %s1371 = sadd.s32 %s38, %s1370
          %s1372 = smul.addr %s1371, 128
          %s1373 = scalar_lea.hbm %s11, %s1372
          %s1375 = sshll.u32 %s1363, 4
          %s1376 = int_to_ptr.vmem [resolvable:$true] %s1375
          %1378 = dma.vmem_to_hbm [thread:$0]  %s1376, 128, %s1373, %s1360
        $region96: #{tpu_custom_call.1} parent=63 // pred_fallthru
          _
      $region64: #{tpu_custom_call.1} parent=5 // pred_fallthru
        _
      %p1379 = scmp.le.s32.totalorder 2, %s28
      // Predicated region
      $region97: #{tpu_custom_call.1} parent=5 // pred_check
        %p1380 = pneg %p1379
      $region98: #{tpu_custom_call.1} parent=5 // pred_check_branch
        %1382 = sbr.rel (%p1380) target = $region100
      $region99: #{tpu_custom_call.1} parent=5 // pred_region
        %s1383 = ssub.s32 %s28, 2
        // Predicated region
        $region101: #{tpu_custom_call.1} parent=99 // pred_check
          %p1384 = pneg %p335
        $region102: #{tpu_custom_call.1} parent=99 // pred_check_branch
          %1386 = sbr.rel (%p1384) target = $region104
        $region103: #{tpu_custom_call.1} parent=99 // pred_region
          %s1387 = sand.u32 %s320, 1
          %s1388 = scalar_lea.sflag [#allocation4], %s1387
          %s1389 = sand.u32 %s320, 1
          %s1390 = smul.addr %s1389, 8
          %s1391 = scalar_lea.vmem [#allocation14], %s1390
          %1392 = dma.done %s1388, 128
        $region104: #{tpu_custom_call.1} parent=99 // pred_fallthru
          _
      $region100: #{tpu_custom_call.1} parent=5 // pred_fallthru
        _
    $region6: #{tpu_custom_call.1} parent=1 // loop_footer
      %s32 = sadd.s32 1, %s28
    $region7: #{tpu_custom_call.1} parent=1 // loop_footer_branch
      %27 = sbr.rel target = $region3
    $region8: #{tpu_custom_call.1} parent=1 // loop_exit
      _
    %1393 = vsyncpa [#allocation3], 1
    %s1394 = scalar_lea.sflag [#allocation3], 1
    %1395 = vsyncpa %s1394, 1
    %1396 = vsyncpa [#allocation6], 1
    %s1397 = scalar_lea.sflag [#allocation6], 1
    %1398 = vsyncpa %s1397, 1
    %1399 = vsyncpa [#allocation9], 1
    %1400 = vsyncpa [#allocation12], 1
    %1401 = vsyncpa [#allocation4], 1
    %s1402 = scalar_lea.sflag [#allocation4], 1
    %1403 = vsyncpa %s1402, 1

</llo_original>
